<compile_context>
chip_gen: v7x
topology: tpu7x:2x2x1
jax: 0.10.0
libtpu: 0.0.40
codegen_flags: <defaults>
</compile_context>

<pallas_src>
import functools

import jax
import jax.numpy as jnp
from jax import lax
from jax.experimental import pallas as pl
from jax.experimental.pallas import tpu as pltpu


def _dilated_conv_kernel(x_ref, w_ref, o_ref, *, K, d, Wp, M):
    """One grid step = one image.

    x_ref: (1, Cin, L)       zero-padded, spatially-flattened image
    w_ref: (K*K, Cout, Cin)  per-tap weights (tap index = kh*K + kw)
    o_ref: (1, Cout, M)      dense (stride-1) conv output, flattened (h*Wp+w)
    """
    Cout = w_ref.shape[1]
    acc = jnp.zeros((Cout, M), jnp.float32)
    for kh in range(K):
        for kw in range(K):
            off = kh * d * Wp + kw * d              # static offset
            rhs = x_ref[0, :, off:off + M]          # (Cin, M) contiguous slice
            acc = acc + jnp.dot(
                w_ref[kh * K + kw],                 # (Cout, Cin)
                rhs,
                preferred_element_type=jnp.float32,
            )
    o_ref[0] = acc.astype(o_ref.dtype)              # full-lane dense store


def _round_up(x, m):
    return (x + m - 1) // m * m


def _vmem_limit_bytes():
    try:
        cap = int(pltpu.get_tpu_info().vmem_capacity_bytes)
    except Exception:
        cap = 64 * 1024 * 1024          # conservative fallback (v7x physical)
    return (cap * 3) // 4               # leave headroom below physical VMEM


def dilated_conv(x_nchw, w_oihw, *, stride=1, d=1, compute_dtype=None):
    """Pallas equivalent of DilatedConv.forward:
    Conv2d(kSize, stride, padding=((kSize-1)//2)*d, dilation=d, bias=False)."""
    out_dtype = x_nchw.dtype
    Cout, Cin, K, K2 = w_oihw.shape
    assert K == K2, "square kernels only"
    pad = ((K - 1) // 2) * d

    if compute_dtype is not None:       # optional bf16 path for v6e/v7x MXU
        x_nchw = x_nchw.astype(compute_dtype)
        w_oihw = w_oihw.astype(compute_dtype)

    N, _, H, W = x_nchw.shape
    Hp, Wp = H + 2 * pad, W + 2 * pad

    # PyTorch / lax output size.
    Ho = (Hp - d * (K - 1) - 1) // stride + 1
    Wo = (Wp - d * (K - 1) - 1) // stride + 1

    # Dense (stride-1) output columns per image, padded to a lane multiple,
    # and the flattened-input length (taps of the garbage tail rows read the
    # extra zeros instead of going out of bounds).
    M = _round_up(Hp * Wp, 128)
    off_max = (K - 1) * d * (Wp + 1)
    L = _round_up(M + off_max, 128)

    # Input prep: spatial zero-pad, flatten H*W, pad the tail (fuses in XLA).
    x_pad = jnp.pad(x_nchw, ((0, 0), (0, 0), (pad, pad), (pad, pad)))
    x_flat = jnp.pad(
        x_pad.reshape(N, Cin, Hp * Wp),
        ((0, 0), (0, 0), (0, L - Hp * Wp)),
    )

    # Weight: OIHW -> (K*K, Cout, Cin) with tap index = kh*K + kw.
    w_taps = jnp.transpose(w_oihw, (2, 3, 0, 1)).reshape(K * K, Cout, Cin)

    kernel = functools.partial(_dilated_conv_kernel, K=K, d=d, Wp=Wp, M=M)

    out_flat = pl.pallas_call(
        kernel,
        out_shape=jax.ShapeDtypeStruct((N, Cout, M), x_flat.dtype),
        grid=(N,),
        in_specs=[
            pl.BlockSpec((1, Cin, L), lambda n: (n, 0, 0)),
            pl.BlockSpec((K * K, Cout, Cin), lambda n: (0, 0, 0)),
        ],
        out_specs=pl.BlockSpec((1, Cout, M), lambda n: (n, 0, 0)),
        compiler_params=pltpu.CompilerParams(
            dimension_semantics=("parallel",),
            vmem_limit_bytes=_vmem_limit_bytes(),
        ),
    )(x_flat, w_taps)

    # Un-flatten, drop the dense-compute padding, subsample for stride > 1.
    out = out_flat[:, :, :Hp * Wp].reshape(N, Cout, Hp, Wp)
    out = out[:, :, ::stride, ::stride][:, :, :Ho, :Wo]
    return out.astype(out_dtype)


def _reference(x, w, stride, d, K):
    pad = ((K - 1) // 2) * d
    return lax.conv_general_dilated(
        x, w,
        window_strides=(stride, stride),
        padding=[(pad, pad), (pad, pad)],
        rhs_dilation=(d, d),
        dimension_numbers=("NCHW", "OIHW", "NCHW"),
    )


if __name__ == "__main__":
    key = jax.random.PRNGKey(0)
    kx, kw = jax.random.split(key)

    # DilatedConv(nIn=4, nOut=8, kSize=3, stride=1, d=2)
    nIn, nOut, kSize = 4, 8, 3
    N, H, W = 2, 16, 16
    x = jax.random.normal(kx, (N, nIn, H, W), dtype=jnp.float32)
    weight = jax.random.normal(kw, (nOut, nIn, kSize, kSize),
                               dtype=jnp.float32) * 0.1

    # Case 1: stride=1, dilation=2 (the classic CGNet dilated branch).
    out = jax.block_until_ready(dilated_conv(x, weight, stride=1, d=2))
    ref = _reference(x, weight, 1, 2, kSize)
    assert out.shape == ref.shape, (out.shape, ref.shape)
    assert jnp.allclose(out, ref, atol=1e-4, rtol=1e-4), (
        float(jnp.max(jnp.abs(out - ref))))

    # Case 2: stride=2, dilation=1 (down-sampling path).
    out2 = jax.block_until_ready(dilated_conv(x, weight, stride=2, d=1))
    ref2 = _reference(x, weight, 2, 1, kSize)
    assert out2.shape == ref2.shape, (out2.shape, ref2.shape)
    assert jnp.allclose(out2, ref2, atol=1e-4, rtol=1e-4), (
        float(jnp.max(jnp.abs(out2 - ref2))))

    print("KERNEL_OK")
</pallas_src>

<mosaic_0001>
module attributes {stable_mosaic.version = 11 : i64} {
  func.func @_dilated_conv_kernel(%arg0: i32, %arg1: memref<1x4x640xf32, #tpu.memory_space<vmem>>, %arg2: memref<9x8x4xf32, #tpu.memory_space<vmem>>, %arg3: memref<1x8x512xf32, #tpu.memory_space<vmem>>) attributes {dimension_semantics = [#tpu.dimension_semantics<parallel>], iteration_bounds = array<i64: 2>, scalar_prefetch = 0 : i64, scratch_operands = 0 : i64, tpu.core_type = #tpu.core_type<tc>, window_params = [{transform_indices = @transform_0, window_bounds = array<i64: 1, 4, 640>}, {pipeline_mode = #tpu.pipeline_mode<synchronous>, transform_indices = @transform_1, window_bounds = array<i64: 9, 8, 4>}, {transform_indices = @transform_2, window_bounds = array<i64: 1, 8, 512>}]} {
    %cst = arith.constant 0.000000e+00 : f32
    %0 = vector.broadcast %cst : f32 to vector<8x512xf32>
    %c0 = arith.constant 0 : index
    %c0_0 = arith.constant 0 : index
    %c0_1 = arith.constant 0 : index
    %1 = vector.load %arg1[%c0, %c0_0, %c0_1] : memref<1x4x640xf32, #tpu.memory_space<vmem>>, vector<1x4x512xf32>
    %2 = vector.shape_cast %1 : vector<1x4x512xf32> to vector<4x512xf32>
    %c0_2 = arith.constant 0 : index
    %c0_3 = arith.constant 0 : index
    %c0_4 = arith.constant 0 : index
    %3 = vector.load %arg2[%c0_2, %c0_3, %c0_4] : memref<9x8x4xf32, #tpu.memory_space<vmem>>, vector<1x8x4xf32>
    %4 = vector.shape_cast %3 : vector<1x8x4xf32> to vector<8x4xf32>
    %cst_5 = arith.constant dense<0.000000e+00> : vector<8x512xf32>
    %5 = tpu.matmul %4, %2, %cst_5 {dimension_numbers = #tpu.dot_dimension_numbers<[1], [0], [0], [1], [0, 0, 1, 1], [], []>} : vector<8x4xf32>, vector<4x512xf32>, vector<8x512xf32> -> vector<8x512xf32>
    %6 = arith.addf %0, %5 : vector<8x512xf32>
    %c0_6 = arith.constant 0 : index
    %c0_7 = arith.constant 0 : index
    %c2 = arith.constant 2 : index
    %7 = vector.load %arg1[%c0_6, %c0_7, %c2] : memref<1x4x640xf32, #tpu.memory_space<vmem>>, vector<1x4x512xf32>
    %8 = vector.shape_cast %7 : vector<1x4x512xf32> to vector<4x512xf32>
    %c1 = arith.constant 1 : index
    %c0_8 = arith.constant 0 : index
    %c0_9 = arith.constant 0 : index
    %9 = vector.load %arg2[%c1, %c0_8, %c0_9] : memref<9x8x4xf32, #tpu.memory_space<vmem>>, vector<1x8x4xf32>
    %10 = vector.shape_cast %9 : vector<1x8x4xf32> to vector<8x4xf32>
    %cst_10 = arith.constant dense<0.000000e+00> : vector<8x512xf32>
    %11 = tpu.matmul %10, %8, %cst_10 {dimension_numbers = #tpu.dot_dimension_numbers<[1], [0], [0], [1], [0, 0, 1, 1], [], []>} : vector<8x4xf32>, vector<4x512xf32>, vector<8x512xf32> -> vector<8x512xf32>
    %12 = arith.addf %6, %11 : vector<8x512xf32>
    %c0_11 = arith.constant 0 : index
    %c0_12 = arith.constant 0 : index
    %c4 = arith.constant 4 : index
    %13 = vector.load %arg1[%c0_11, %c0_12, %c4] : memref<1x4x640xf32, #tpu.memory_space<vmem>>, vector<1x4x512xf32>
    %14 = vector.shape_cast %13 : vector<1x4x512xf32> to vector<4x512xf32>
    %c2_13 = arith.constant 2 : index
    %c0_14 = arith.constant 0 : index
    %c0_15 = arith.constant 0 : index
    %15 = vector.load %arg2[%c2_13, %c0_14, %c0_15] : memref<9x8x4xf32, #tpu.memory_space<vmem>>, vector<1x8x4xf32>
    %16 = vector.shape_cast %15 : vector<1x8x4xf32> to vector<8x4xf32>
    %cst_16 = arith.constant dense<0.000000e+00> : vector<8x512xf32>
    %17 = tpu.matmul %16, %14, %cst_16 {dimension_numbers = #tpu.dot_dimension_numbers<[1], [0], [0], [1], [0, 0, 1, 1], [], []>} : vector<8x4xf32>, vector<4x512xf32>, vector<8x512xf32> -> vector<8x512xf32>
    %18 = arith.addf %12, %17 : vector<8x512xf32>
    %c0_17 = arith.constant 0 : index
    %c0_18 = arith.constant 0 : index
    %c40 = arith.constant 40 : index
    %19 = vector.load %arg1[%c0_17, %c0_18, %c40] : memref<1x4x640xf32, #tpu.memory_space<vmem>>, vector<1x4x512xf32>
    %20 = vector.shape_cast %19 : vector<1x4x512xf32> to vector<4x512xf32>
    %c3 = arith.constant 3 : index
    %c0_19 = arith.constant 0 : index
    %c0_20 = arith.constant 0 : index
    %21 = vector.load %arg2[%c3, %c0_19, %c0_20] : memref<9x8x4xf32, #tpu.memory_space<vmem>>, vector<1x8x4xf32>
    %22 = vector.shape_cast %21 : vector<1x8x4xf32> to vector<8x4xf32>
    %cst_21 = arith.constant dense<0.000000e+00> : vector<8x512xf32>
    %23 = tpu.matmul %22, %20, %cst_21 {dimension_numbers = #tpu.dot_dimension_numbers<[1], [0], [0], [1], [0, 0, 1, 1], [], []>} : vector<8x4xf32>, vector<4x512xf32>, vector<8x512xf32> -> vector<8x512xf32>
    %24 = arith.addf %18, %23 : vector<8x512xf32>
    %c0_22 = arith.constant 0 : index
    %c0_23 = arith.constant 0 : index
    %c42 = arith.constant 42 : index
    %25 = vector.load %arg1[%c0_22, %c0_23, %c42] : memref<1x4x640xf32, #tpu.memory_space<vmem>>, vector<1x4x512xf32>
    %26 = vector.shape_cast %25 : vector<1x4x512xf32> to vector<4x512xf32>
    %c4_24 = arith.constant 4 : index
    %c0_25 = arith.constant 0 : index
    %c0_26 = arith.constant 0 : index
    %27 = vector.load %arg2[%c4_24, %c0_25, %c0_26] : memref<9x8x4xf32, #tpu.memory_space<vmem>>, vector<1x8x4xf32>
    %28 = vector.shape_cast %27 : vector<1x8x4xf32> to vector<8x4xf32>
    %cst_27 = arith.constant dense<0.000000e+00> : vector<8x512xf32>
    %29 = tpu.matmul %28, %26, %cst_27 {dimension_numbers = #tpu.dot_dimension_numbers<[1], [0], [0], [1], [0, 0, 1, 1], [], []>} : vector<8x4xf32>, vector<4x512xf32>, vector<8x512xf32> -> vector<8x512xf32>
    %30 = arith.addf %24, %29 : vector<8x512xf32>
    %c0_28 = arith.constant 0 : index
    %c0_29 = arith.constant 0 : index
    %c44 = arith.constant 44 : index
    %31 = vector.load %arg1[%c0_28, %c0_29, %c44] : memref<1x4x640xf32, #tpu.memory_space<vmem>>, vector<1x4x512xf32>
    %32 = vector.shape_cast %31 : vector<1x4x512xf32> to vector<4x512xf32>
    %c5 = arith.constant 5 : index
    %c0_30 = arith.constant 0 : index
    %c0_31 = arith.constant 0 : index
    %33 = vector.load %arg2[%c5, %c0_30, %c0_31] : memref<9x8x4xf32, #tpu.memory_space<vmem>>, vector<1x8x4xf32>
    %34 = vector.shape_cast %33 : vector<1x8x4xf32> to vector<8x4xf32>
    %cst_32 = arith.constant dense<0.000000e+00> : vector<8x512xf32>
    %35 = tpu.matmul %34, %32, %cst_32 {dimension_numbers = #tpu.dot_dimension_numbers<[1], [0], [0], [1], [0, 0, 1, 1], [], []>} : vector<8x4xf32>, vector<4x512xf32>, vector<8x512xf32> -> vector<8x512xf32>
    %36 = arith.addf %30, %35 : vector<8x512xf32>
    %c0_33 = arith.constant 0 : index
    %c0_34 = arith.constant 0 : index
    %c80 = arith.constant 80 : index
    %37 = vector.load %arg1[%c0_33, %c0_34, %c80] : memref<1x4x640xf32, #tpu.memory_space<vmem>>, vector<1x4x512xf32>
    %38 = vector.shape_cast %37 : vector<1x4x512xf32> to vector<4x512xf32>
    %c6 = arith.constant 6 : index
    %c0_35 = arith.constant 0 : index
    %c0_36 = arith.constant 0 : index
    %39 = vector.load %arg2[%c6, %c0_35, %c0_36] : memref<9x8x4xf32, #tpu.memory_space<vmem>>, vector<1x8x4xf32>
    %40 = vector.shape_cast %39 : vector<1x8x4xf32> to vector<8x4xf32>
    %cst_37 = arith.constant dense<0.000000e+00> : vector<8x512xf32>
    %41 = tpu.matmul %40, %38, %cst_37 {dimension_numbers = #tpu.dot_dimension_numbers<[1], [0], [0], [1], [0, 0, 1, 1], [], []>} : vector<8x4xf32>, vector<4x512xf32>, vector<8x512xf32> -> vector<8x512xf32>
    %42 = arith.addf %36, %41 : vector<8x512xf32>
    %c0_38 = arith.constant 0 : index
    %c0_39 = arith.constant 0 : index
    %c82 = arith.constant 82 : index
    %43 = vector.load %arg1[%c0_38, %c0_39, %c82] : memref<1x4x640xf32, #tpu.memory_space<vmem>>, vector<1x4x512xf32>
    %44 = vector.shape_cast %43 : vector<1x4x512xf32> to vector<4x512xf32>
    %c7 = arith.constant 7 : index
    %c0_40 = arith.constant 0 : index
    %c0_41 = arith.constant 0 : index
    %45 = vector.load %arg2[%c7, %c0_40, %c0_41] : memref<9x8x4xf32, #tpu.memory_space<vmem>>, vector<1x8x4xf32>
    %46 = vector.shape_cast %45 : vector<1x8x4xf32> to vector<8x4xf32>
    %cst_42 = arith.constant dense<0.000000e+00> : vector<8x512xf32>
    %47 = tpu.matmul %46, %44, %cst_42 {dimension_numbers = #tpu.dot_dimension_numbers<[1], [0], [0], [1], [0, 0, 1, 1], [], []>} : vector<8x4xf32>, vector<4x512xf32>, vector<8x512xf32> -> vector<8x512xf32>
    %48 = arith.addf %42, %47 : vector<8x512xf32>
    %c0_43 = arith.constant 0 : index
    %c0_44 = arith.constant 0 : index
    %c84 = arith.constant 84 : index
    %49 = vector.load %arg1[%c0_43, %c0_44, %c84] : memref<1x4x640xf32, #tpu.memory_space<vmem>>, vector<1x4x512xf32>
    %50 = vector.shape_cast %49 : vector<1x4x512xf32> to vector<4x512xf32>
    %c8 = arith.constant 8 : index
    %c0_45 = arith.constant 0 : index
    %c0_46 = arith.constant 0 : index
    %51 = vector.load %arg2[%c8, %c0_45, %c0_46] : memref<9x8x4xf32, #tpu.memory_space<vmem>>, vector<1x8x4xf32>
    %52 = vector.shape_cast %51 : vector<1x8x4xf32> to vector<8x4xf32>
    %cst_47 = arith.constant dense<0.000000e+00> : vector<8x512xf32>
    %53 = tpu.matmul %52, %50, %cst_47 {dimension_numbers = #tpu.dot_dimension_numbers<[1], [0], [0], [1], [0, 0, 1, 1], [], []>} : vector<8x4xf32>, vector<4x512xf32>, vector<8x512xf32> -> vector<8x512xf32>
    %54 = arith.addf %48, %53 : vector<8x512xf32>
    %c0_48 = arith.constant 0 : index
    %c0_49 = arith.constant 0 : index
    %c0_50 = arith.constant 0 : index
    %55 = vector.load %arg3[%c0_48, %c0_49, %c0_50] : memref<1x8x512xf32, #tpu.memory_space<vmem>>, vector<1x8x512xf32>
    %56 = vector.shape_cast %55 : vector<1x8x512xf32> to vector<8x512xf32>
    %57 = vector.shape_cast %54 : vector<8x512xf32> to vector<1x8x512xf32>
    tpu.vector_store %arg3[%c0_48, %c0_49, %c0_50], %57 {strides = array<i32>} : memref<1x8x512xf32, #tpu.memory_space<vmem>>, vector<1x8x512xf32>,
    return
  }
  func.func @transform_0(%arg0: i32) -> (i32, i32, i32) {
    %c0_i32 = arith.constant 0 : i32
    %c0_i32_0 = arith.constant 0 : i32
    %c0_i32_1 = arith.constant 0 : i32
    return %arg0, %c0_i32, %c0_i32_0 : i32, i32, i32
  }
  func.func @transform_1(%arg0: i32) -> (i32, i32, i32) {
    %c0_i32 = arith.constant 0 : i32
    %c0_i32_0 = arith.constant 0 : i32
    %c0_i32_1 = arith.constant 0 : i32
    %c0_i32_2 = arith.constant 0 : i32
    return %c0_i32, %c0_i32_0, %c0_i32_1 : i32, i32, i32
  }
  func.func @transform_2(%arg0: i32) -> (i32, i32, i32) {
    %c0_i32 = arith.constant 0 : i32
    %c0_i32_0 = arith.constant 0 : i32
    %c0_i32_1 = arith.constant 0 : i32
    return %arg0, %c0_i32, %c0_i32_0 : i32, i32, i32
  }
}

</mosaic_0001>

<llo_original>
// kernel: tpu_custom_call.1
$region0: #{tpu_custom_call.1}
  #allocation0 [shape = 'u32[]', space=smem, size = 0x4, offset = 0x4, fixed_abs, tag = 'smem constant byte address 0x4 - core index']
  #allocation1 [shape = 'u32[144,128]{1,0:T(1,128)}', space=vmem, size = 0x12000, scoped, tag = 'internal scratch']
  %s0 = inlined_call_operand.vmem [shape: f32[2,4,640], index: 0, kind: input, shape index: {}]
  %s1 = inlined_call_operand.vmem [shape: f32[9,8,4], index: 1, kind: input, shape index: {}]
  %s2 = inlined_call_operand.hbm [shape: f32[2,8,512], index: 2, kind: output, shape index: {}]
  %s3 = sld [smem:[#allocation0]]
  $region41: #{tpu_custom_call.1} parent=0
    _
  %s5 = ssub.s32 1, %s3
  %s6 = scalar_select 0, %s5, %s3
  $region1: #{tpu_custom_call.1} parent=0
    #allocation2 [shape = 'u8[32768]{0}', space=vmem, size = 0x8000, scoped, tag = 'output window, operand 0']
    #allocation3 [shape = 's32[2]{0}', space=sflag, size = 0x8, scoped, tag = 'scoped memory for tpu_custom_call.1']
    %7 = vsyncpa [#allocation3], 0
    %s8 = scalar_lea.sflag [#allocation3], 1
    %9 = vsyncpa %s8, 0
    loop: start=0, step=1, limit=4
    $region2: #{tpu_custom_call.1} parent=1 // loop_pre_header
      _
    $region3: #{tpu_custom_call.1} parent=1 // loop_header
      %s11 = sphi 0, %s15
      %p12 = scmp.ge.s32.totalorder %s11, 4
      %s21 = sphi 0, %s23
      %s24 = sphi 0, %s21
      %s25 = sphi 0, %s24
      %s41 = sphi 0, %s25
      %s45 = sphi 0, %s45
      %s47 = sphi 0, %s45
      %s48 = sphi 0, %s47
      %s62 = sphi 0, %s48
      %s68 = sphi 0, %s70
      %s71 = sphi 0, %s68
      %s72 = sphi 0, %s71
      %s88 = sphi 0, %s72
    $region4: #{tpu_custom_call.1} parent=1 // loop_header_branch
      %14 = sbr.rel (%p12) target = $region8
    $region5: #{tpu_custom_call.1} parent=1 // loop_body
      %s16 = ssub.s32 %s11, 1
      %s17 = ssub.s32 %s11, 2
      %s18 = sadd.s32 %s11, 1
      %s19 = ssub.s32 %s11, %s18
      %p20 = scmp.eq.s32.totalorder %s19, 0
      %s22 = sadd.s32 %s21, 1
      %s23 = scalar_select %p20, %s21, %s22
      %p26 = pneg %p20
      %p27 = scmp.eq.s32.totalorder %s11, 1
      %p28 = por %p26, %p27
      %p29 = scmp.ne.s32.totalorder %s21, %s24
      %p30 = scmp.eq.s32.totalorder %s11, 0
      %p31 = por %p29, %p30
      %p32 = scmp.ne.s32.totalorder %s21, %s24
      %p33 = scmp.eq.s32.totalorder %s16, 1
      %p34 = por %p32, %p33
      %p35 = scmp.ne.s32.totalorder %s24, %s25
      %p36 = scmp.eq.s32.totalorder %s16, 0
      %p37 = por %p35, %p36
      %p38 = scmp.ne.s32.totalorder %s24, %s25
      %p39 = scmp.eq.s32.totalorder %s17, 1
      %p40 = por %p38, %p39
      %p42 = scmp.ne.s32.totalorder %s25, %s41
      %p43 = scmp.eq.s32.totalorder %s17, 0
      %p44 = por %p42, %p43
      %s46 = sadd.s32 %s45, 1
      %p49 = scmp.eq.s32.totalorder %s11, 1
      %p50 = scmp.ne.s32.totalorder %s45, %s47
      %p51 = scmp.eq.s32.totalorder %s11, 0
      %p52 = por %p50, %p51
      %p53 = scmp.ne.s32.totalorder %s45, %s47
      %p54 = scmp.eq.s32.totalorder %s16, 1
      %p55 = por %p53, %p54
      %p56 = scmp.ne.s32.totalorder %s47, %s48
      %p57 = scmp.eq.s32.totalorder %s16, 0
      %p58 = por %p56, %p57
      %p59 = scmp.ne.s32.totalorder %s47, %s48
      %p60 = scmp.eq.s32.totalorder %s17, 1
      %p61 = por %p59, %p60
      %p63 = scmp.ne.s32.totalorder %s48, %s62
      %p64 = scmp.eq.s32.totalorder %s17, 0
      %p65 = por %p63, %p64
      %s66 = ssub.s32 %s11, %s18
      %p67 = scmp.eq.s32.totalorder %s66, 0
      %s69 = sadd.s32 %s68, 1
      %s70 = scalar_select %p67, %s68, %s69
      %p73 = pneg %p67
      %p74 = scmp.eq.s32.totalorder %s11, 1
      %p75 = por %p73, %p74
      %p76 = scmp.ne.s32.totalorder %s68, %s71
      %p77 = scmp.eq.s32.totalorder %s11, 0
      %p78 = por %p76, %p77
      %p79 = scmp.ne.s32.totalorder %s68, %s71
      %p80 = scmp.eq.s32.totalorder %s16, 1
      %p81 = por %p79, %p80
      %p82 = scmp.ne.s32.totalorder %s71, %s72
      %p83 = scmp.eq.s32.totalorder %s16, 0
      %p84 = por %p82, %p83
      %p85 = scmp.ne.s32.totalorder %s71, %s72
      %p86 = scmp.eq.s32.totalorder %s17, 1
      %p87 = por %p85, %p86
      %p89 = scmp.ne.s32.totalorder %s72, %s88
      %p90 = scmp.eq.s32.totalorder %s17, 0
      %p91 = por %p89, %p90
      %p92 = scmp.le.s32.totalorder 1, %s11
      %p93 = scmp.lt.s32.totalorder %s11, 3
      %p94 = pnand %p92, %p93
      %p95 = pneg %p94
      // Predicated region
      $region9: #{tpu_custom_call.1} parent=5 // pred_check
        _
      $region10: #{tpu_custom_call.1} parent=5 // pred_check_branch
        %97 = sbr.rel (%p94) target = $region12
      $region11: #{tpu_custom_call.1} parent=5 // pred_region
        %s98 = ssub.s32 %s11, 1
        // Predicated region
        $region13: #{tpu_custom_call.1} parent=11 // pred_check
          %p99 = pneg %p58
        $region14: #{tpu_custom_call.1} parent=11 // pred_check_branch
          %101 = sbr.rel (%p99) target = $region16
        $region15: #{tpu_custom_call.1} parent=11 // pred_region
          _
        $region16: #{tpu_custom_call.1} parent=11 // pred_fallthru
          _
      $region12: #{tpu_custom_call.1} parent=5 // pred_fallthru
        _
      %p102 = scmp.lt.s32.totalorder %s11, 2
      // Predicated region
      $region17: #{tpu_custom_call.1} parent=5 // pred_check
        %p103 = pneg %p102
      $region18: #{tpu_custom_call.1} parent=5 // pred_check_branch
        %105 = sbr.rel (%p103) target = $region20
      $region19: #{tpu_custom_call.1} parent=5 // pred_region
        // Predicated region
        $region21: #{tpu_custom_call.1} parent=19 // pred_check
          %p106 = pneg %p31
        $region22: #{tpu_custom_call.1} parent=19 // pred_check_branch
          %108 = sbr.rel (%p106) target = $region24
        $region23: #{tpu_custom_call.1} parent=19 // pred_region
          %p109 = scmp.lt.s32.totalorder %s11, 1
          %s110 = scalar_select %p109, %s11, 1
          %s111 = smul.addr %s110, 5
          %s112 = smul.addr %s111, 4
          %s113 = scalar_lea.vmem %s0, %s112
        $region24: #{tpu_custom_call.1} parent=19 // pred_fallthru
          _
      $region20: #{tpu_custom_call.1} parent=5 // pred_fallthru
        _
      %p114 = scmp.le.s32.totalorder 1, %s11
      %p115 = scmp.lt.s32.totalorder %s11, 3
      %p116 = pnand %p114, %p115
      %p117 = pneg %p116
      // Predicated region
      $region25: #{tpu_custom_call.1} parent=5 // pred_check
        _
      $region26: #{tpu_custom_call.1} parent=5 // pred_check_branch
        %119 = sbr.rel (%p116) target = $region28
      $region27: #{tpu_custom_call.1} parent=5 // pred_region
        %s120 = ssub.s32 %s11, 1
        %p121 = scmp.lt.s32.totalorder %s16, 1
        %s122 = scalar_select %p121, %s16, 1
        %s123 = smul.addr %s122, 5
        %s124 = smul.addr %s123, 4
        %s125 = scalar_lea.vmem %s0, %s124
        %p126 = pneg %p37
        %p127 = pneg %p34
        %p128 = pneg %p58
        %p129 = pneg %p55
        %p130 = pneg %p84
        %p131 = pneg %p81
        %s132 = sand.u32 %s71, 1
        %s133 = scalar_lea.sflag [#allocation3], %s132
        %s134 = sand.u32 %s71, 1
        %s135 = smul.addr %s134, 32
        %s136 = scalar_lea.vmem [#allocation2], %s135
        %p137 = scmp.lt.s32.totalorder %s16, 1
        %s138 = scalar_select %p137, %s16, 1
        %s139 = smul.addr %s138, 5
        %s140 = smul.addr %s139, 4
        %s141 = scalar_lea.vmem %s0, %s140
        %v142 = vld [vmem:[%s141] sm:$0xff]
        %v143 = vld [vmem:[%s141 + $0x8] sm:$0xff]
        %v144 = vld [vmem:[%s1] sm:$0xff]
        %v145 = vld [vmem:[%s141] sm:$0xff]
        %v146 = vld [vmem:[%s141 + $0x8] sm:$0xff]
        %v147 = vld [vmem:[%s141 + $0x10] sm:$0xf]
        %s148 = scalar_lea.vmem %s1, 8
        %v149 = vld [vmem:[%s148] sm:$0xff]
        %v153 = vcombine.high %v145, %v145
        %v154 = vcombine.high %v146, %v146
        %155 = vrot.lane.b32.xlu0 %v145, 126
        %v156 = vpop.permute.xlu0 %155
        %157 = vrot.lane.b32.xlu0 %v153, 126
        %v158 = vpop.permute.xlu0 %157
        %159 = vrot.lane.b32.xlu0 %v146, 126
        %v160 = vpop.permute.xlu0 %159
        %161 = vrot.lane.b32.xlu0 %v154, 126
        %v162 = vpop.permute.xlu0 %161
        %163 = vrot.lane.b32.xlu0 %v147, 126
        %v164 = vpop.permute.xlu0 %163
        %vm165 = vcmask 1031168
        %v166 = vsel %vm165, %v156, %v158
        %v167 = vsel %vm165, %v158, %v160
        %v168 = vsel %vm165, %v160, %v162
        %v169 = vsel %vm165, %v162, %v164
        %vm170 = vcmask 31744
        %v172 = vsel %vm170, %v149, 0
        %vm174 = vcmask 1043456
        %v175 = vsel %vm174, %v166, 0
        %v177 = vsel %vm174, %v167, 0
        %v179 = vsel %vm174, %v168, 0
        %v181 = vsel %vm174, %v169, 0
        %183 = vmatprep.subr.mxu0 %v177
        %184 = vmatpush1.msra.mxu0 %v175
        %185 = vmatprep.subr.mxu0 0.0
        %186 = vmatpush1.msra.mxu0 0.0
        %187 = vmatprep.subr.mxu0 0.0
        %188 = vmatpush1.msra.mxu0 0.0
        %189 = vmatprep.subr.mxu0 0.0
        %190 = vmatpush1.msra.mxu0 0.0
        %191 = vmatprep.subr.mxu0 0.0
        %192 = vmatpush1.msra.mxu0 0.0
        %193 = vmatprep.subr.mxu0 0.0
        %194 = vmatpush1.msra.mxu0 0.0
        %195 = vmatprep.subr.mxu0 0.0
        %196 = vmatpush1.msra.mxu0 0.0
        %197 = vmatprep.subr.mxu0 0.0
        %198 = vmatpush1.msra.mxu0 0.0
        %199 = vmatprep.subr.mxu0 0.0
        %200 = vmatpush1.msra.mxu0 0.0
        %201 = vmatprep.subr.mxu0 0.0
        %202 = vmatpush1.msra.mxu0 0.0
        %203 = vmatprep.subr.mxu0 0.0
        %204 = vmatpush1.msra.mxu0 0.0
        %205 = vmatprep.subr.mxu0 0.0
        %206 = vmatpush1.msra.mxu0 0.0
        %207 = vmatprep.subr.mxu0 0.0
        %208 = vmatpush1.msra.mxu0 0.0
        %209 = vmatprep.subr.mxu0 0.0
        %210 = vmatpush1.msra.mxu0 0.0
        %211 = vmatprep.subr.mxu0 0.0
        %212 = vmatpush1.msra.mxu0 0.0
        %213 = vmatprep.subr.mxu0 0.0
        %214 = vmatpush1.msra.mxu0 0.0
        %215 = vmatprep.subr.mxu0 0.0
        %216 = vmatpush1.msra.mxu0 0.0
        %217 = vmatprep.subr.mxu0 0.0
        %218 = vmatpush1.msra.mxu0 0.0
        %219 = vmatprep.subr.mxu0 0.0
        %220 = vmatpush1.msra.mxu0 0.0
        %221 = vmatprep.subr.mxu0 0.0
        %222 = vmatpush1.msra.mxu0 0.0
        %223 = vmatprep.subr.mxu0 0.0
        %224 = vmatpush1.msra.mxu0 0.0
        %225 = vmatprep.subr.mxu0 0.0
        %226 = vmatpush1.msra.mxu0 0.0
        %227 = vmatprep.subr.mxu0 0.0
        %228 = vmatpush1.msra.mxu0 0.0
        %229 = vmatprep.subr.mxu0 0.0
        %230 = vmatpush1.msra.mxu0 0.0
        %231 = vmatprep.subr.mxu0 0.0
        %232 = vmatpush1.msra.mxu0 0.0
        %233 = vmatprep.subr.mxu0 0.0
        %234 = vmatpush1.msra.mxu0 0.0
        %235 = vmatprep.subr.mxu0 0.0
        %236 = vmatpush1.msra.mxu0 0.0
        %237 = vmatprep.subr.mxu0 0.0
        %238 = vmatpush1.msra.mxu0 0.0
        %239 = vmatprep.subr.mxu0 0.0
        %240 = vmatpush1.msra.mxu0 0.0
        %241 = vmatprep.subr.mxu0 0.0
        %242 = vmatpush1.msra.mxu0 0.0
        %243 = vmatprep.subr.mxu0 0.0
        %244 = vmatpush1.msra.mxu0 0.0
        %245 = vmatprep.subr.mxu0 0.0
        %246 = vmatpush1.msra.mxu0 0.0
        %247 = vmatprep.mubr.f32.mxu0 0.0
        %248 = vmatmul.mubr.f32.gmra.mrb[0].mxu0 %v172
        %v249 = vpop.f32.mrb[0].mxu0
        %v250 = vadd.f32 0.0, %v249
        %v251 = vpop.f32.mrb[0].mxu0
        %v252 = vadd.f32 0.0, %v251
        %253 = vdwg.mxu0
        %254 = vmatprep.subr.mxu0 %v181
        %255 = vmatpush1.msra.mxu0 %v179
        %256 = vmatprep.subr.mxu0 0.0
        %257 = vmatpush1.msra.mxu0 0.0
        %258 = vmatprep.subr.mxu0 0.0
        %259 = vmatpush1.msra.mxu0 0.0
        %260 = vmatprep.subr.mxu0 0.0
        %261 = vmatpush1.msra.mxu0 0.0
        %262 = vmatprep.subr.mxu0 0.0
        %263 = vmatpush1.msra.mxu0 0.0
        %264 = vmatprep.subr.mxu0 0.0
        %265 = vmatpush1.msra.mxu0 0.0
        %266 = vmatprep.subr.mxu0 0.0
        %267 = vmatpush1.msra.mxu0 0.0
        %268 = vmatprep.subr.mxu0 0.0
        %269 = vmatpush1.msra.mxu0 0.0
        %270 = vmatprep.subr.mxu0 0.0
        %271 = vmatpush1.msra.mxu0 0.0
        %272 = vmatprep.subr.mxu0 0.0
        %273 = vmatpush1.msra.mxu0 0.0
        %274 = vmatprep.subr.mxu0 0.0
        %275 = vmatpush1.msra.mxu0 0.0
        %276 = vmatprep.subr.mxu0 0.0
        %277 = vmatpush1.msra.mxu0 0.0
        %278 = vmatprep.subr.mxu0 0.0
        %279 = vmatpush1.msra.mxu0 0.0
        %280 = vmatprep.subr.mxu0 0.0
        %281 = vmatpush1.msra.mxu0 0.0
        %282 = vmatprep.subr.mxu0 0.0
        %283 = vmatpush1.msra.mxu0 0.0
        %284 = vmatprep.subr.mxu0 0.0
        %285 = vmatpush1.msra.mxu0 0.0
        %286 = vmatprep.subr.mxu0 0.0
        %287 = vmatpush1.msra.mxu0 0.0
        %288 = vmatprep.subr.mxu0 0.0
        %289 = vmatpush1.msra.mxu0 0.0
        %290 = vmatprep.subr.mxu0 0.0
        %291 = vmatpush1.msra.mxu0 0.0
        %292 = vmatprep.subr.mxu0 0.0
        %293 = vmatpush1.msra.mxu0 0.0
        %294 = vmatprep.subr.mxu0 0.0
        %295 = vmatpush1.msra.mxu0 0.0
        %296 = vmatprep.subr.mxu0 0.0
        %297 = vmatpush1.msra.mxu0 0.0
        %298 = vmatprep.subr.mxu0 0.0
        %299 = vmatpush1.msra.mxu0 0.0
        %300 = vmatprep.subr.mxu0 0.0
        %301 = vmatpush1.msra.mxu0 0.0
        %302 = vmatprep.subr.mxu0 0.0
        %303 = vmatpush1.msra.mxu0 0.0
        %304 = vmatprep.subr.mxu0 0.0
        %305 = vmatpush1.msra.mxu0 0.0
        %306 = vmatprep.subr.mxu0 0.0
        %307 = vmatpush1.msra.mxu0 0.0
        %308 = vmatprep.subr.mxu0 0.0
        %309 = vmatpush1.msra.mxu0 0.0
        %310 = vmatprep.subr.mxu0 0.0
        %311 = vmatpush1.msra.mxu0 0.0
        %312 = vmatprep.subr.mxu0 0.0
        %313 = vmatpush1.msra.mxu0 0.0
        %314 = vmatprep.subr.mxu0 0.0
        %315 = vmatpush1.msra.mxu0 0.0
        %316 = vmatprep.subr.mxu0 0.0
        %317 = vmatpush1.msra.mxu0 0.0
        %318 = vmatprep.mubr.f32.mxu0 0.0
        %319 = vmatmul.mubr.f32.gmra.mrb[0].mxu0 %v172
        %v320 = vpop.f32.mrb[0].mxu0
        %v321 = vadd.f32 0.0, %v320
        %v322 = vpop.f32.mrb[0].mxu0
        %v323 = vadd.f32 0.0, %v322
        %324 = vdwg.mxu0
        %v327 = vcombine.high %v142, %v142
        %v328 = vcombine.high %v143, %v143
        %v330 = vsel %vm170, %v144, 0
        %v332 = vsel %vm174, %v142, 0
        %v334 = vsel %vm174, %v327, 0
        %v336 = vsel %vm174, %v143, 0
        %v338 = vsel %vm174, %v328, 0
        %340 = vmatprep.subr.mxu0 %v334
        %341 = vmatpush1.msra.mxu0 %v332
        %342 = vmatprep.subr.mxu0 0.0
        %343 = vmatpush1.msra.mxu0 0.0
        %344 = vmatprep.subr.mxu0 0.0
        %345 = vmatpush1.msra.mxu0 0.0
        %346 = vmatprep.subr.mxu0 0.0
        %347 = vmatpush1.msra.mxu0 0.0
        %348 = vmatprep.subr.mxu0 0.0
        %349 = vmatpush1.msra.mxu0 0.0
        %350 = vmatprep.subr.mxu0 0.0
        %351 = vmatpush1.msra.mxu0 0.0
        %352 = vmatprep.subr.mxu0 0.0
        %353 = vmatpush1.msra.mxu0 0.0
        %354 = vmatprep.subr.mxu0 0.0
        %355 = vmatpush1.msra.mxu0 0.0
        %356 = vmatprep.subr.mxu0 0.0
        %357 = vmatpush1.msra.mxu0 0.0
        %358 = vmatprep.subr.mxu0 0.0
        %359 = vmatpush1.msra.mxu0 0.0
        %360 = vmatprep.subr.mxu0 0.0
        %361 = vmatpush1.msra.mxu0 0.0
        %362 = vmatprep.subr.mxu0 0.0
        %363 = vmatpush1.msra.mxu0 0.0
        %364 = vmatprep.subr.mxu0 0.0
        %365 = vmatpush1.msra.mxu0 0.0
        %366 = vmatprep.subr.mxu0 0.0
        %367 = vmatpush1.msra.mxu0 0.0
        %368 = vmatprep.subr.mxu0 0.0
        %369 = vmatpush1.msra.mxu0 0.0
        %370 = vmatprep.subr.mxu0 0.0
        %371 = vmatpush1.msra.mxu0 0.0
        %372 = vmatprep.subr.mxu0 0.0
        %373 = vmatpush1.msra.mxu0 0.0
        %374 = vmatprep.subr.mxu0 0.0
        %375 = vmatpush1.msra.mxu0 0.0
        %376 = vmatprep.subr.mxu0 0.0
        %377 = vmatpush1.msra.mxu0 0.0
        %378 = vmatprep.subr.mxu0 0.0
        %379 = vmatpush1.msra.mxu0 0.0
        %380 = vmatprep.subr.mxu0 0.0
        %381 = vmatpush1.msra.mxu0 0.0
        %382 = vmatprep.subr.mxu0 0.0
        %383 = vmatpush1.msra.mxu0 0.0
        %384 = vmatprep.subr.mxu0 0.0
        %385 = vmatpush1.msra.mxu0 0.0
        %386 = vmatprep.subr.mxu0 0.0
        %387 = vmatpush1.msra.mxu0 0.0
        %388 = vmatprep.subr.mxu0 0.0
        %389 = vmatpush1.msra.mxu0 0.0
        %390 = vmatprep.subr.mxu0 0.0
        %391 = vmatpush1.msra.mxu0 0.0
        %392 = vmatprep.subr.mxu0 0.0
        %393 = vmatpush1.msra.mxu0 0.0
        %394 = vmatprep.subr.mxu0 0.0
        %395 = vmatpush1.msra.mxu0 0.0
        %396 = vmatprep.subr.mxu0 0.0
        %397 = vmatpush1.msra.mxu0 0.0
        %398 = vmatprep.subr.mxu0 0.0
        %399 = vmatpush1.msra.mxu0 0.0
        %400 = vmatprep.subr.mxu0 0.0
        %401 = vmatpush1.msra.mxu0 0.0
        %402 = vmatprep.subr.mxu0 0.0
        %403 = vmatpush1.msra.mxu0 0.0
        %404 = vmatprep.mubr.f32.mxu0 0.0
        %405 = vmatmul.mubr.f32.gmra.mrb[0].mxu0 %v330
        %v406 = vpop.f32.mrb[0].mxu0
        %v407 = vadd.f32 %v250, %v406
        %v408 = vpop.f32.mrb[0].mxu0
        %v409 = vadd.f32 %v252, %v408
        %410 = vdwg.mxu0
        %411 = vmatprep.subr.mxu0 %v338
        %412 = vmatpush1.msra.mxu0 %v336
        %413 = vmatprep.subr.mxu0 0.0
        %414 = vmatpush1.msra.mxu0 0.0
        %415 = vmatprep.subr.mxu0 0.0
        %416 = vmatpush1.msra.mxu0 0.0
        %417 = vmatprep.subr.mxu0 0.0
        %418 = vmatpush1.msra.mxu0 0.0
        %419 = vmatprep.subr.mxu0 0.0
        %420 = vmatpush1.msra.mxu0 0.0
        %421 = vmatprep.subr.mxu0 0.0
        %422 = vmatpush1.msra.mxu0 0.0
        %423 = vmatprep.subr.mxu0 0.0
        %424 = vmatpush1.msra.mxu0 0.0
        %425 = vmatprep.subr.mxu0 0.0
        %426 = vmatpush1.msra.mxu0 0.0
        %427 = vmatprep.subr.mxu0 0.0
        %428 = vmatpush1.msra.mxu0 0.0
        %429 = vmatprep.subr.mxu0 0.0
        %430 = vmatpush1.msra.mxu0 0.0
        %431 = vmatprep.subr.mxu0 0.0
        %432 = vmatpush1.msra.mxu0 0.0
        %433 = vmatprep.subr.mxu0 0.0
        %434 = vmatpush1.msra.mxu0 0.0
        %435 = vmatprep.subr.mxu0 0.0
        %436 = vmatpush1.msra.mxu0 0.0
        %437 = vmatprep.subr.mxu0 0.0
        %438 = vmatpush1.msra.mxu0 0.0
        %439 = vmatprep.subr.mxu0 0.0
        %440 = vmatpush1.msra.mxu0 0.0
        %441 = vmatprep.subr.mxu0 0.0
        %442 = vmatpush1.msra.mxu0 0.0
        %443 = vmatprep.subr.mxu0 0.0
        %444 = vmatpush1.msra.mxu0 0.0
        %445 = vmatprep.subr.mxu0 0.0
        %446 = vmatpush1.msra.mxu0 0.0
        %447 = vmatprep.subr.mxu0 0.0
        %448 = vmatpush1.msra.mxu0 0.0
        %449 = vmatprep.subr.mxu0 0.0
        %450 = vmatpush1.msra.mxu0 0.0
        %451 = vmatprep.subr.mxu0 0.0
        %452 = vmatpush1.msra.mxu0 0.0
        %453 = vmatprep.subr.mxu0 0.0
        %454 = vmatpush1.msra.mxu0 0.0
        %455 = vmatprep.subr.mxu0 0.0
        %456 = vmatpush1.msra.mxu0 0.0
        %457 = vmatprep.subr.mxu0 0.0
        %458 = vmatpush1.msra.mxu0 0.0
        %459 = vmatprep.subr.mxu0 0.0
        %460 = vmatpush1.msra.mxu0 0.0
        %461 = vmatprep.subr.mxu0 0.0
        %462 = vmatpush1.msra.mxu0 0.0
        %463 = vmatprep.subr.mxu0 0.0
        %464 = vmatpush1.msra.mxu0 0.0
        %465 = vmatprep.subr.mxu0 0.0
        %466 = vmatpush1.msra.mxu0 0.0
        %467 = vmatprep.subr.mxu0 0.0
        %468 = vmatpush1.msra.mxu0 0.0
        %469 = vmatprep.subr.mxu0 0.0
        %470 = vmatpush1.msra.mxu0 0.0
        %471 = vmatprep.subr.mxu0 0.0
        %472 = vmatpush1.msra.mxu0 0.0
        %473 = vmatprep.subr.mxu0 0.0
        %474 = vmatpush1.msra.mxu0 0.0
        %475 = vmatprep.mubr.f32.mxu0 0.0
        %476 = vmatmul.mubr.f32.gmra.mrb[0].mxu0 %v330
        %v477 = vpop.f32.mrb[0].mxu0
        %v478 = vadd.f32 %v321, %v477
        %v479 = vpop.f32.mrb[0].mxu0
        %v480 = vadd.f32 %v323, %v479
        %481 = vdwg.mxu0
        %v482 = vld [vmem:[%s141] sm:$0xff]
        %v483 = vld [vmem:[%s141 + $0x8] sm:$0xff]
        %v484 = vld [vmem:[%s141 + $0x10] sm:$0xf]
        %s485 = scalar_lea.vmem %s1, 16
        %v486 = vld [vmem:[%s485] sm:$0xff]
        %v490 = vcombine.high %v482, %v482
        %v491 = vcombine.high %v483, %v483
        %492 = vrot.lane.b32.xlu0 %v482, 124
        %v493 = vpop.permute.xlu0 %492
        %494 = vrot.lane.b32.xlu0 %v490, 124
        %v495 = vpop.permute.xlu0 %494
        %496 = vrot.lane.b32.xlu0 %v483, 124
        %v497 = vpop.permute.xlu0 %496
        %498 = vrot.lane.b32.xlu0 %v491, 124
        %v499 = vpop.permute.xlu0 %498
        %500 = vrot.lane.b32.xlu0 %v484, 124
        %v501 = vpop.permute.xlu0 %500
        %vm502 = vcmask 1014784
        %v503 = vsel %vm502, %v493, %v495
        %v504 = vsel %vm502, %v495, %v497
        %v505 = vsel %vm502, %v497, %v499
        %v506 = vsel %vm502, %v499, %v501
        %v508 = vsel %vm170, %v486, 0
        %v510 = vsel %vm174, %v503, 0
        %v512 = vsel %vm174, %v504, 0
        %v514 = vsel %vm174, %v505, 0
        %v516 = vsel %vm174, %v506, 0
        %518 = vmatprep.subr.mxu0 %v512
        %519 = vmatpush1.msra.mxu0 %v510
        %520 = vmatprep.subr.mxu0 0.0
        %521 = vmatpush1.msra.mxu0 0.0
        %522 = vmatprep.subr.mxu0 0.0
        %523 = vmatpush1.msra.mxu0 0.0
        %524 = vmatprep.subr.mxu0 0.0
        %525 = vmatpush1.msra.mxu0 0.0
        %526 = vmatprep.subr.mxu0 0.0
        %527 = vmatpush1.msra.mxu0 0.0
        %528 = vmatprep.subr.mxu0 0.0
        %529 = vmatpush1.msra.mxu0 0.0
        %530 = vmatprep.subr.mxu0 0.0
        %531 = vmatpush1.msra.mxu0 0.0
        %532 = vmatprep.subr.mxu0 0.0
        %533 = vmatpush1.msra.mxu0 0.0
        %534 = vmatprep.subr.mxu0 0.0
        %535 = vmatpush1.msra.mxu0 0.0
        %536 = vmatprep.subr.mxu0 0.0
        %537 = vmatpush1.msra.mxu0 0.0
        %538 = vmatprep.subr.mxu0 0.0
        %539 = vmatpush1.msra.mxu0 0.0
        %540 = vmatprep.subr.mxu0 0.0
        %541 = vmatpush1.msra.mxu0 0.0
        %542 = vmatprep.subr.mxu0 0.0
        %543 = vmatpush1.msra.mxu0 0.0
        %544 = vmatprep.subr.mxu0 0.0
        %545 = vmatpush1.msra.mxu0 0.0
        %546 = vmatprep.subr.mxu0 0.0
        %547 = vmatpush1.msra.mxu0 0.0
        %548 = vmatprep.subr.mxu0 0.0
        %549 = vmatpush1.msra.mxu0 0.0
        %550 = vmatprep.subr.mxu0 0.0
        %551 = vmatpush1.msra.mxu0 0.0
        %552 = vmatprep.subr.mxu0 0.0
        %553 = vmatpush1.msra.mxu0 0.0
        %554 = vmatprep.subr.mxu0 0.0
        %555 = vmatpush1.msra.mxu0 0.0
        %556 = vmatprep.subr.mxu0 0.0
        %557 = vmatpush1.msra.mxu0 0.0
        %558 = vmatprep.subr.mxu0 0.0
        %559 = vmatpush1.msra.mxu0 0.0
        %560 = vmatprep.subr.mxu0 0.0
        %561 = vmatpush1.msra.mxu0 0.0
        %562 = vmatprep.subr.mxu0 0.0
        %563 = vmatpush1.msra.mxu0 0.0
        %564 = vmatprep.subr.mxu0 0.0
        %565 = vmatpush1.msra.mxu0 0.0
        %566 = vmatprep.subr.mxu0 0.0
        %567 = vmatpush1.msra.mxu0 0.0
        %568 = vmatprep.subr.mxu0 0.0
        %569 = vmatpush1.msra.mxu0 0.0
        %570 = vmatprep.subr.mxu0 0.0
        %571 = vmatpush1.msra.mxu0 0.0
        %572 = vmatprep.subr.mxu0 0.0
        %573 = vmatpush1.msra.mxu0 0.0
        %574 = vmatprep.subr.mxu0 0.0
        %575 = vmatpush1.msra.mxu0 0.0
        %576 = vmatprep.subr.mxu0 0.0
        %577 = vmatpush1.msra.mxu0 0.0
        %578 = vmatprep.subr.mxu0 0.0
        %579 = vmatpush1.msra.mxu0 0.0
        %580 = vmatprep.subr.mxu0 0.0
        %581 = vmatpush1.msra.mxu0 0.0
        %582 = vmatprep.mubr.f32.mxu0 0.0
        %583 = vmatmul.mubr.f32.gmra.mrb[0].mxu0 %v508
        %v584 = vpop.f32.mrb[0].mxu0
        %v585 = vadd.f32 0.0, %v584
        %v586 = vpop.f32.mrb[0].mxu0
        %v587 = vadd.f32 0.0, %v586
        %588 = vdwg.mxu0
        %589 = vmatprep.subr.mxu0 %v516
        %590 = vmatpush1.msra.mxu0 %v514
        %591 = vmatprep.subr.mxu0 0.0
        %592 = vmatpush1.msra.mxu0 0.0
        %593 = vmatprep.subr.mxu0 0.0
        %594 = vmatpush1.msra.mxu0 0.0
        %595 = vmatprep.subr.mxu0 0.0
        %596 = vmatpush1.msra.mxu0 0.0
        %597 = vmatprep.subr.mxu0 0.0
        %598 = vmatpush1.msra.mxu0 0.0
        %599 = vmatprep.subr.mxu0 0.0
        %600 = vmatpush1.msra.mxu0 0.0
        %601 = vmatprep.subr.mxu0 0.0
        %602 = vmatpush1.msra.mxu0 0.0
        %603 = vmatprep.subr.mxu0 0.0
        %604 = vmatpush1.msra.mxu0 0.0
        %605 = vmatprep.subr.mxu0 0.0
        %606 = vmatpush1.msra.mxu0 0.0
        %607 = vmatprep.subr.mxu0 0.0
        %608 = vmatpush1.msra.mxu0 0.0
        %609 = vmatprep.subr.mxu0 0.0
        %610 = vmatpush1.msra.mxu0 0.0
        %611 = vmatprep.subr.mxu0 0.0
        %612 = vmatpush1.msra.mxu0 0.0
        %613 = vmatprep.subr.mxu0 0.0
        %614 = vmatpush1.msra.mxu0 0.0
        %615 = vmatprep.subr.mxu0 0.0
        %616 = vmatpush1.msra.mxu0 0.0
        %617 = vmatprep.subr.mxu0 0.0
        %618 = vmatpush1.msra.mxu0 0.0
        %619 = vmatprep.subr.mxu0 0.0
        %620 = vmatpush1.msra.mxu0 0.0
        %621 = vmatprep.subr.mxu0 0.0
        %622 = vmatpush1.msra.mxu0 0.0
        %623 = vmatprep.subr.mxu0 0.0
        %624 = vmatpush1.msra.mxu0 0.0
        %625 = vmatprep.subr.mxu0 0.0
        %626 = vmatpush1.msra.mxu0 0.0
        %627 = vmatprep.subr.mxu0 0.0
        %628 = vmatpush1.msra.mxu0 0.0
        %629 = vmatprep.subr.mxu0 0.0
        %630 = vmatpush1.msra.mxu0 0.0
        %631 = vmatprep.subr.mxu0 0.0
        %632 = vmatpush1.msra.mxu0 0.0
        %633 = vmatprep.subr.mxu0 0.0
        %634 = vmatpush1.msra.mxu0 0.0
        %635 = vmatprep.subr.mxu0 0.0
        %636 = vmatpush1.msra.mxu0 0.0
        %637 = vmatprep.subr.mxu0 0.0
        %638 = vmatpush1.msra.mxu0 0.0
        %639 = vmatprep.subr.mxu0 0.0
        %640 = vmatpush1.msra.mxu0 0.0
        %641 = vmatprep.subr.mxu0 0.0
        %642 = vmatpush1.msra.mxu0 0.0
        %643 = vmatprep.subr.mxu0 0.0
        %644 = vmatpush1.msra.mxu0 0.0
        %645 = vmatprep.subr.mxu0 0.0
        %646 = vmatpush1.msra.mxu0 0.0
        %647 = vmatprep.subr.mxu0 0.0
        %648 = vmatpush1.msra.mxu0 0.0
        %649 = vmatprep.subr.mxu0 0.0
        %650 = vmatpush1.msra.mxu0 0.0
        %651 = vmatprep.subr.mxu0 0.0
        %652 = vmatpush1.msra.mxu0 0.0
        %653 = vmatprep.mubr.f32.mxu0 0.0
        %654 = vmatmul.mubr.f32.gmra.mrb[0].mxu0 %v508
        %v655 = vpop.f32.mrb[0].mxu0
        %v656 = vadd.f32 0.0, %v655
        %v657 = vpop.f32.mrb[0].mxu0
        %v658 = vadd.f32 0.0, %v657
        %659 = vdwg.mxu0
        %v660 = vadd.f32 %v407, %v585
        %v661 = vadd.f32 %v409, %v587
        %v662 = vadd.f32 %v478, %v656
        %v663 = vadd.f32 %v480, %v658
        %v664 = vld [vmem:[%s141] sm:$0xff]
        %v665 = vld [vmem:[%s141 + $0x8] sm:$0xff]
        %v666 = vld [vmem:[%s141 + $0x10] sm:$0xf]
        %s667 = scalar_lea.vmem %s1, 24
        %v668 = vld [vmem:[%s667] sm:$0xff]
        %v672 = vcombine.high %v664, %v664
        %v673 = vcombine.high %v665, %v665
        %674 = vrot.lane.b32.xlu0 %v664, 88
        %v675 = vpop.permute.xlu0 %674
        %676 = vrot.lane.b32.xlu0 %v672, 88
        %v677 = vpop.permute.xlu0 %676
        %678 = vrot.lane.b32.xlu0 %v665, 88
        %v679 = vpop.permute.xlu0 %678
        %680 = vrot.lane.b32.xlu0 %v673, 88
        %v681 = vpop.permute.xlu0 %680
        %682 = vrot.lane.b32.xlu0 %v666, 88
        %v683 = vpop.permute.xlu0 %682
        %vm684 = vcmask 719872
        %v685 = vsel %vm684, %v675, %v677
        %v686 = vsel %vm684, %v677, %v679
        %v687 = vsel %vm684, %v679, %v681
        %v688 = vsel %vm684, %v681, %v683
        %v690 = vsel %vm170, %v668, 0
        %v692 = vsel %vm174, %v685, 0
        %v694 = vsel %vm174, %v686, 0
        %v696 = vsel %vm174, %v687, 0
        %v698 = vsel %vm174, %v688, 0
        %700 = vmatprep.subr.mxu0 %v694
        %701 = vmatpush1.msra.mxu0 %v692
        %702 = vmatprep.subr.mxu0 0.0
        %703 = vmatpush1.msra.mxu0 0.0
        %704 = vmatprep.subr.mxu0 0.0
        %705 = vmatpush1.msra.mxu0 0.0
        %706 = vmatprep.subr.mxu0 0.0
        %707 = vmatpush1.msra.mxu0 0.0
        %708 = vmatprep.subr.mxu0 0.0
        %709 = vmatpush1.msra.mxu0 0.0
        %710 = vmatprep.subr.mxu0 0.0
        %711 = vmatpush1.msra.mxu0 0.0
        %712 = vmatprep.subr.mxu0 0.0
        %713 = vmatpush1.msra.mxu0 0.0
        %714 = vmatprep.subr.mxu0 0.0
        %715 = vmatpush1.msra.mxu0 0.0
        %716 = vmatprep.subr.mxu0 0.0
        %717 = vmatpush1.msra.mxu0 0.0
        %718 = vmatprep.subr.mxu0 0.0
        %719 = vmatpush1.msra.mxu0 0.0
        %720 = vmatprep.subr.mxu0 0.0
        %721 = vmatpush1.msra.mxu0 0.0
        %722 = vmatprep.subr.mxu0 0.0
        %723 = vmatpush1.msra.mxu0 0.0
        %724 = vmatprep.subr.mxu0 0.0
        %725 = vmatpush1.msra.mxu0 0.0
        %726 = vmatprep.subr.mxu0 0.0
        %727 = vmatpush1.msra.mxu0 0.0
        %728 = vmatprep.subr.mxu0 0.0
        %729 = vmatpush1.msra.mxu0 0.0
        %730 = vmatprep.subr.mxu0 0.0
        %731 = vmatpush1.msra.mxu0 0.0
        %732 = vmatprep.subr.mxu0 0.0
        %733 = vmatpush1.msra.mxu0 0.0
        %734 = vmatprep.subr.mxu0 0.0
        %735 = vmatpush1.msra.mxu0 0.0
        %736 = vmatprep.subr.mxu0 0.0
        %737 = vmatpush1.msra.mxu0 0.0
        %738 = vmatprep.subr.mxu0 0.0
        %739 = vmatpush1.msra.mxu0 0.0
        %740 = vmatprep.subr.mxu0 0.0
        %741 = vmatpush1.msra.mxu0 0.0
        %742 = vmatprep.subr.mxu0 0.0
        %743 = vmatpush1.msra.mxu0 0.0
        %744 = vmatprep.subr.mxu0 0.0
        %745 = vmatpush1.msra.mxu0 0.0
        %746 = vmatprep.subr.mxu0 0.0
        %747 = vmatpush1.msra.mxu0 0.0
        %748 = vmatprep.subr.mxu0 0.0
        %749 = vmatpush1.msra.mxu0 0.0
        %750 = vmatprep.subr.mxu0 0.0
        %751 = vmatpush1.msra.mxu0 0.0
        %752 = vmatprep.subr.mxu0 0.0
        %753 = vmatpush1.msra.mxu0 0.0
        %754 = vmatprep.subr.mxu0 0.0
        %755 = vmatpush1.msra.mxu0 0.0
        %756 = vmatprep.subr.mxu0 0.0
        %757 = vmatpush1.msra.mxu0 0.0
        %758 = vmatprep.subr.mxu0 0.0
        %759 = vmatpush1.msra.mxu0 0.0
        %760 = vmatprep.subr.mxu0 0.0
        %761 = vmatpush1.msra.mxu0 0.0
        %762 = vmatprep.subr.mxu0 0.0
        %763 = vmatpush1.msra.mxu0 0.0
        %764 = vmatprep.mubr.f32.mxu0 0.0
        %765 = vmatmul.mubr.f32.gmra.mrb[0].mxu0 %v690
        %v766 = vpop.f32.mrb[0].mxu0
        %v767 = vadd.f32 0.0, %v766
        %v768 = vpop.f32.mrb[0].mxu0
        %v769 = vadd.f32 0.0, %v768
        %770 = vdwg.mxu0
        %771 = vmatprep.subr.mxu0 %v698
        %772 = vmatpush1.msra.mxu0 %v696
        %773 = vmatprep.subr.mxu0 0.0
        %774 = vmatpush1.msra.mxu0 0.0
        %775 = vmatprep.subr.mxu0 0.0
        %776 = vmatpush1.msra.mxu0 0.0
        %777 = vmatprep.subr.mxu0 0.0
        %778 = vmatpush1.msra.mxu0 0.0
        %779 = vmatprep.subr.mxu0 0.0
        %780 = vmatpush1.msra.mxu0 0.0
        %781 = vmatprep.subr.mxu0 0.0
        %782 = vmatpush1.msra.mxu0 0.0
        %783 = vmatprep.subr.mxu0 0.0
        %784 = vmatpush1.msra.mxu0 0.0
        %785 = vmatprep.subr.mxu0 0.0
        %786 = vmatpush1.msra.mxu0 0.0
        %787 = vmatprep.subr.mxu0 0.0
        %788 = vmatpush1.msra.mxu0 0.0
        %789 = vmatprep.subr.mxu0 0.0
        %790 = vmatpush1.msra.mxu0 0.0
        %791 = vmatprep.subr.mxu0 0.0
        %792 = vmatpush1.msra.mxu0 0.0
        %793 = vmatprep.subr.mxu0 0.0
        %794 = vmatpush1.msra.mxu0 0.0
        %795 = vmatprep.subr.mxu0 0.0
        %796 = vmatpush1.msra.mxu0 0.0
        %797 = vmatprep.subr.mxu0 0.0
        %798 = vmatpush1.msra.mxu0 0.0
        %799 = vmatprep.subr.mxu0 0.0
        %800 = vmatpush1.msra.mxu0 0.0
        %801 = vmatprep.subr.mxu0 0.0
        %802 = vmatpush1.msra.mxu0 0.0
        %803 = vmatprep.subr.mxu0 0.0
        %804 = vmatpush1.msra.mxu0 0.0
        %805 = vmatprep.subr.mxu0 0.0
        %806 = vmatpush1.msra.mxu0 0.0
        %807 = vmatprep.subr.mxu0 0.0
        %808 = vmatpush1.msra.mxu0 0.0
        %809 = vmatprep.subr.mxu0 0.0
        %810 = vmatpush1.msra.mxu0 0.0
        %811 = vmatprep.subr.mxu0 0.0
        %812 = vmatpush1.msra.mxu0 0.0
        %813 = vmatprep.subr.mxu0 0.0
        %814 = vmatpush1.msra.mxu0 0.0
        %815 = vmatprep.subr.mxu0 0.0
        %816 = vmatpush1.msra.mxu0 0.0
        %817 = vmatprep.subr.mxu0 0.0
        %818 = vmatpush1.msra.mxu0 0.0
        %819 = vmatprep.subr.mxu0 0.0
        %820 = vmatpush1.msra.mxu0 0.0
        %821 = vmatprep.subr.mxu0 0.0
        %822 = vmatpush1.msra.mxu0 0.0
        %823 = vmatprep.subr.mxu0 0.0
        %824 = vmatpush1.msra.mxu0 0.0
        %825 = vmatprep.subr.mxu0 0.0
        %826 = vmatpush1.msra.mxu0 0.0
        %827 = vmatprep.subr.mxu0 0.0
        %828 = vmatpush1.msra.mxu0 0.0
        %829 = vmatprep.subr.mxu0 0.0
        %830 = vmatpush1.msra.mxu0 0.0
        %831 = vmatprep.subr.mxu0 0.0
        %832 = vmatpush1.msra.mxu0 0.0
        %833 = vmatprep.subr.mxu0 0.0
        %834 = vmatpush1.msra.mxu0 0.0
        %835 = vmatprep.mubr.f32.mxu0 0.0
        %836 = vmatmul.mubr.f32.gmra.mrb[0].mxu0 %v690
        %v837 = vpop.f32.mrb[0].mxu0
        %v838 = vadd.f32 0.0, %v837
        %v839 = vpop.f32.mrb[0].mxu0
        %v840 = vadd.f32 0.0, %v839
        %841 = vdwg.mxu0
        %v842 = vadd.f32 %v660, %v767
        %v843 = vadd.f32 %v661, %v769
        %v844 = vadd.f32 %v662, %v838
        %v845 = vadd.f32 %v663, %v840
        %v846 = vld [vmem:[%s141] sm:$0xff]
        %v847 = vld [vmem:[%s141 + $0x8] sm:$0xff]
        %v848 = vld [vmem:[%s141 + $0x10] sm:$0xf]
        %s849 = scalar_lea.vmem %s1, 32
        %v850 = vld [vmem:[%s849] sm:$0xff]
        %v854 = vcombine.high %v846, %v846
        %v855 = vcombine.high %v847, %v847
        %856 = vrot.lane.b32.xlu0 %v846, 86
        %v857 = vpop.permute.xlu0 %856
        %858 = vrot.lane.b32.xlu0 %v854, 86
        %v859 = vpop.permute.xlu0 %858
        %860 = vrot.lane.b32.xlu0 %v847, 86
        %v861 = vpop.permute.xlu0 %860
        %862 = vrot.lane.b32.xlu0 %v855, 86
        %v863 = vpop.permute.xlu0 %862
        %864 = vrot.lane.b32.xlu0 %v848, 86
        %v865 = vpop.permute.xlu0 %864
        %vm866 = vcmask 703488
        %v867 = vsel %vm866, %v857, %v859
        %v868 = vsel %vm866, %v859, %v861
        %v869 = vsel %vm866, %v861, %v863
        %v870 = vsel %vm866, %v863, %v865
        %v872 = vsel %vm170, %v850, 0
        %v874 = vsel %vm174, %v867, 0
        %v876 = vsel %vm174, %v868, 0
        %v878 = vsel %vm174, %v869, 0
        %v880 = vsel %vm174, %v870, 0
        %882 = vmatprep.subr.mxu0 %v876
        %883 = vmatpush1.msra.mxu0 %v874
        %884 = vmatprep.subr.mxu0 0.0
        %885 = vmatpush1.msra.mxu0 0.0
        %886 = vmatprep.subr.mxu0 0.0
        %887 = vmatpush1.msra.mxu0 0.0
        %888 = vmatprep.subr.mxu0 0.0
        %889 = vmatpush1.msra.mxu0 0.0
        %890 = vmatprep.subr.mxu0 0.0
        %891 = vmatpush1.msra.mxu0 0.0
        %892 = vmatprep.subr.mxu0 0.0
        %893 = vmatpush1.msra.mxu0 0.0
        %894 = vmatprep.subr.mxu0 0.0
        %895 = vmatpush1.msra.mxu0 0.0
        %896 = vmatprep.subr.mxu0 0.0
        %897 = vmatpush1.msra.mxu0 0.0
        %898 = vmatprep.subr.mxu0 0.0
        %899 = vmatpush1.msra.mxu0 0.0
        %900 = vmatprep.subr.mxu0 0.0
        %901 = vmatpush1.msra.mxu0 0.0
        %902 = vmatprep.subr.mxu0 0.0
        %903 = vmatpush1.msra.mxu0 0.0
        %904 = vmatprep.subr.mxu0 0.0
        %905 = vmatpush1.msra.mxu0 0.0
        %906 = vmatprep.subr.mxu0 0.0
        %907 = vmatpush1.msra.mxu0 0.0
        %908 = vmatprep.subr.mxu0 0.0
        %909 = vmatpush1.msra.mxu0 0.0
        %910 = vmatprep.subr.mxu0 0.0
        %911 = vmatpush1.msra.mxu0 0.0
        %912 = vmatprep.subr.mxu0 0.0
        %913 = vmatpush1.msra.mxu0 0.0
        %914 = vmatprep.subr.mxu0 0.0
        %915 = vmatpush1.msra.mxu0 0.0
        %916 = vmatprep.subr.mxu0 0.0
        %917 = vmatpush1.msra.mxu0 0.0
        %918 = vmatprep.subr.mxu0 0.0
        %919 = vmatpush1.msra.mxu0 0.0
        %920 = vmatprep.subr.mxu0 0.0
        %921 = vmatpush1.msra.mxu0 0.0
        %922 = vmatprep.subr.mxu0 0.0
        %923 = vmatpush1.msra.mxu0 0.0
        %924 = vmatprep.subr.mxu0 0.0
        %925 = vmatpush1.msra.mxu0 0.0
        %926 = vmatprep.subr.mxu0 0.0
        %927 = vmatpush1.msra.mxu0 0.0
        %928 = vmatprep.subr.mxu0 0.0
        %929 = vmatpush1.msra.mxu0 0.0
        %930 = vmatprep.subr.mxu0 0.0
        %931 = vmatpush1.msra.mxu0 0.0
        %932 = vmatprep.subr.mxu0 0.0
        %933 = vmatpush1.msra.mxu0 0.0
        %934 = vmatprep.subr.mxu0 0.0
        %935 = vmatpush1.msra.mxu0 0.0
        %936 = vmatprep.subr.mxu0 0.0
        %937 = vmatpush1.msra.mxu0 0.0
        %938 = vmatprep.subr.mxu0 0.0
        %939 = vmatpush1.msra.mxu0 0.0
        %940 = vmatprep.subr.mxu0 0.0
        %941 = vmatpush1.msra.mxu0 0.0
        %942 = vmatprep.subr.mxu0 0.0
        %943 = vmatpush1.msra.mxu0 0.0
        %944 = vmatprep.subr.mxu0 0.0
        %945 = vmatpush1.msra.mxu0 0.0
        %946 = vmatprep.mubr.f32.mxu0 0.0
        %947 = vmatmul.mubr.f32.gmra.mrb[0].mxu0 %v872
        %v948 = vpop.f32.mrb[0].mxu0
        %v949 = vadd.f32 0.0, %v948
        %v950 = vpop.f32.mrb[0].mxu0
        %v951 = vadd.f32 0.0, %v950
        %952 = vdwg.mxu0
        %953 = vmatprep.subr.mxu0 %v880
        %954 = vmatpush1.msra.mxu0 %v878
        %955 = vmatprep.subr.mxu0 0.0
        %956 = vmatpush1.msra.mxu0 0.0
        %957 = vmatprep.subr.mxu0 0.0
        %958 = vmatpush1.msra.mxu0 0.0
        %959 = vmatprep.subr.mxu0 0.0
        %960 = vmatpush1.msra.mxu0 0.0
        %961 = vmatprep.subr.mxu0 0.0
        %962 = vmatpush1.msra.mxu0 0.0
        %963 = vmatprep.subr.mxu0 0.0
        %964 = vmatpush1.msra.mxu0 0.0
        %965 = vmatprep.subr.mxu0 0.0
        %966 = vmatpush1.msra.mxu0 0.0
        %967 = vmatprep.subr.mxu0 0.0
        %968 = vmatpush1.msra.mxu0 0.0
        %969 = vmatprep.subr.mxu0 0.0
        %970 = vmatpush1.msra.mxu0 0.0
        %971 = vmatprep.subr.mxu0 0.0
        %972 = vmatpush1.msra.mxu0 0.0
        %973 = vmatprep.subr.mxu0 0.0
        %974 = vmatpush1.msra.mxu0 0.0
        %975 = vmatprep.subr.mxu0 0.0
        %976 = vmatpush1.msra.mxu0 0.0
        %977 = vmatprep.subr.mxu0 0.0
        %978 = vmatpush1.msra.mxu0 0.0
        %979 = vmatprep.subr.mxu0 0.0
        %980 = vmatpush1.msra.mxu0 0.0
        %981 = vmatprep.subr.mxu0 0.0
        %982 = vmatpush1.msra.mxu0 0.0
        %983 = vmatprep.subr.mxu0 0.0
        %984 = vmatpush1.msra.mxu0 0.0
        %985 = vmatprep.subr.mxu0 0.0
        %986 = vmatpush1.msra.mxu0 0.0
        %987 = vmatprep.subr.mxu0 0.0
        %988 = vmatpush1.msra.mxu0 0.0
        %989 = vmatprep.subr.mxu0 0.0
        %990 = vmatpush1.msra.mxu0 0.0
        %991 = vmatprep.subr.mxu0 0.0
        %992 = vmatpush1.msra.mxu0 0.0
        %993 = vmatprep.subr.mxu0 0.0
        %994 = vmatpush1.msra.mxu0 0.0
        %995 = vmatprep.subr.mxu0 0.0
        %996 = vmatpush1.msra.mxu0 0.0
        %997 = vmatprep.subr.mxu0 0.0
        %998 = vmatpush1.msra.mxu0 0.0
        %999 = vmatprep.subr.mxu0 0.0
        %1000 = vmatpush1.msra.mxu0 0.0
        %1001 = vmatprep.subr.mxu0 0.0
        %1002 = vmatpush1.msra.mxu0 0.0
        %1003 = vmatprep.subr.mxu0 0.0
        %1004 = vmatpush1.msra.mxu0 0.0
        %1005 = vmatprep.subr.mxu0 0.0
        %1006 = vmatpush1.msra.mxu0 0.0
        %1007 = vmatprep.subr.mxu0 0.0
        %1008 = vmatpush1.msra.mxu0 0.0
        %1009 = vmatprep.subr.mxu0 0.0
        %1010 = vmatpush1.msra.mxu0 0.0
        %1011 = vmatprep.subr.mxu0 0.0
        %1012 = vmatpush1.msra.mxu0 0.0
        %1013 = vmatprep.subr.mxu0 0.0
        %1014 = vmatpush1.msra.mxu0 0.0
        %1015 = vmatprep.subr.mxu0 0.0
        %1016 = vmatpush1.msra.mxu0 0.0
        %1017 = vmatprep.mubr.f32.mxu0 0.0
        %1018 = vmatmul.mubr.f32.gmra.mrb[0].mxu0 %v872
        %v1019 = vpop.f32.mrb[0].mxu0
        %v1020 = vadd.f32 0.0, %v1019
        %v1021 = vpop.f32.mrb[0].mxu0
        %v1022 = vadd.f32 0.0, %v1021
        %1023 = vdwg.mxu0
        %v1024 = vadd.f32 %v842, %v949
        %v1025 = vadd.f32 %v843, %v951
        %v1026 = vadd.f32 %v844, %v1020
        %v1027 = vadd.f32 %v845, %v1022
        %v1028 = vld [vmem:[%s141] sm:$0xff]
        %v1029 = vld [vmem:[%s141 + $0x8] sm:$0xff]
        %v1030 = vld [vmem:[%s141 + $0x10] sm:$0xf]
        %s1031 = scalar_lea.vmem %s1, 40
        %v1032 = vld [vmem:[%s1031] sm:$0xff]
        %v1036 = vcombine.high %v1028, %v1028
        %v1037 = vcombine.high %v1029, %v1029
        %1038 = vrot.lane.b32.xlu0 %v1028, 84
        %v1039 = vpop.permute.xlu0 %1038
        %1040 = vrot.lane.b32.xlu0 %v1036, 84
        %v1041 = vpop.permute.xlu0 %1040
        %1042 = vrot.lane.b32.xlu0 %v1029, 84
        %v1043 = vpop.permute.xlu0 %1042
        %1044 = vrot.lane.b32.xlu0 %v1037, 84
        %v1045 = vpop.permute.xlu0 %1044
        %1046 = vrot.lane.b32.xlu0 %v1030, 84
        %v1047 = vpop.permute.xlu0 %1046
        %vm1048 = vcmask 687104
        %v1049 = vsel %vm1048, %v1039, %v1041
        %v1050 = vsel %vm1048, %v1041, %v1043
        %v1051 = vsel %vm1048, %v1043, %v1045
        %v1052 = vsel %vm1048, %v1045, %v1047
        %v1054 = vsel %vm170, %v1032, 0
        %v1056 = vsel %vm174, %v1049, 0
        %v1058 = vsel %vm174, %v1050, 0
        %v1060 = vsel %vm174, %v1051, 0
        %v1062 = vsel %vm174, %v1052, 0
        %1064 = vmatprep.subr.mxu0 %v1058
        %1065 = vmatpush1.msra.mxu0 %v1056
        %1066 = vmatprep.subr.mxu0 0.0
        %1067 = vmatpush1.msra.mxu0 0.0
        %1068 = vmatprep.subr.mxu0 0.0
        %1069 = vmatpush1.msra.mxu0 0.0
        %1070 = vmatprep.subr.mxu0 0.0
        %1071 = vmatpush1.msra.mxu0 0.0
        %1072 = vmatprep.subr.mxu0 0.0
        %1073 = vmatpush1.msra.mxu0 0.0
        %1074 = vmatprep.subr.mxu0 0.0
        %1075 = vmatpush1.msra.mxu0 0.0
        %1076 = vmatprep.subr.mxu0 0.0
        %1077 = vmatpush1.msra.mxu0 0.0
        %1078 = vmatprep.subr.mxu0 0.0
        %1079 = vmatpush1.msra.mxu0 0.0
        %1080 = vmatprep.subr.mxu0 0.0
        %1081 = vmatpush1.msra.mxu0 0.0
        %1082 = vmatprep.subr.mxu0 0.0
        %1083 = vmatpush1.msra.mxu0 0.0
        %1084 = vmatprep.subr.mxu0 0.0
        %1085 = vmatpush1.msra.mxu0 0.0
        %1086 = vmatprep.subr.mxu0 0.0
        %1087 = vmatpush1.msra.mxu0 0.0
        %1088 = vmatprep.subr.mxu0 0.0
        %1089 = vmatpush1.msra.mxu0 0.0
        %1090 = vmatprep.subr.mxu0 0.0
        %1091 = vmatpush1.msra.mxu0 0.0
        %1092 = vmatprep.subr.mxu0 0.0
        %1093 = vmatpush1.msra.mxu0 0.0
        %1094 = vmatprep.subr.mxu0 0.0
        %1095 = vmatpush1.msra.mxu0 0.0
        %1096 = vmatprep.subr.mxu0 0.0
        %1097 = vmatpush1.msra.mxu0 0.0
        %1098 = vmatprep.subr.mxu0 0.0
        %1099 = vmatpush1.msra.mxu0 0.0
        %1100 = vmatprep.subr.mxu0 0.0
        %1101 = vmatpush1.msra.mxu0 0.0
        %1102 = vmatprep.subr.mxu0 0.0
        %1103 = vmatpush1.msra.mxu0 0.0
        %1104 = vmatprep.subr.mxu0 0.0
        %1105 = vmatpush1.msra.mxu0 0.0
        %1106 = vmatprep.subr.mxu0 0.0
        %1107 = vmatpush1.msra.mxu0 0.0
        %1108 = vmatprep.subr.mxu0 0.0
        %1109 = vmatpush1.msra.mxu0 0.0
        %1110 = vmatprep.subr.mxu0 0.0
        %1111 = vmatpush1.msra.mxu0 0.0
        %1112 = vmatprep.subr.mxu0 0.0
        %1113 = vmatpush1.msra.mxu0 0.0
        %1114 = vmatprep.subr.mxu0 0.0
        %1115 = vmatpush1.msra.mxu0 0.0
        %1116 = vmatprep.subr.mxu0 0.0
        %1117 = vmatpush1.msra.mxu0 0.0
        %1118 = vmatprep.subr.mxu0 0.0
        %1119 = vmatpush1.msra.mxu0 0.0
        %1120 = vmatprep.subr.mxu0 0.0
        %1121 = vmatpush1.msra.mxu0 0.0
        %1122 = vmatprep.subr.mxu0 0.0
        %1123 = vmatpush1.msra.mxu0 0.0
        %1124 = vmatprep.subr.mxu0 0.0
        %1125 = vmatpush1.msra.mxu0 0.0
        %1126 = vmatprep.subr.mxu0 0.0
        %1127 = vmatpush1.msra.mxu0 0.0
        %1128 = vmatprep.mubr.f32.mxu0 0.0
        %1129 = vmatmul.mubr.f32.gmra.mrb[0].mxu0 %v1054
        %v1130 = vpop.f32.mrb[0].mxu0
        %v1131 = vadd.f32 0.0, %v1130
        %v1132 = vpop.f32.mrb[0].mxu0
        %v1133 = vadd.f32 0.0, %v1132
        %1134 = vdwg.mxu0
        %1135 = vmatprep.subr.mxu0 %v1062
        %1136 = vmatpush1.msra.mxu0 %v1060
        %1137 = vmatprep.subr.mxu0 0.0
        %1138 = vmatpush1.msra.mxu0 0.0
        %1139 = vmatprep.subr.mxu0 0.0
        %1140 = vmatpush1.msra.mxu0 0.0
        %1141 = vmatprep.subr.mxu0 0.0
        %1142 = vmatpush1.msra.mxu0 0.0
        %1143 = vmatprep.subr.mxu0 0.0
        %1144 = vmatpush1.msra.mxu0 0.0
        %1145 = vmatprep.subr.mxu0 0.0
        %1146 = vmatpush1.msra.mxu0 0.0
        %1147 = vmatprep.subr.mxu0 0.0
        %1148 = vmatpush1.msra.mxu0 0.0
        %1149 = vmatprep.subr.mxu0 0.0
        %1150 = vmatpush1.msra.mxu0 0.0
        %1151 = vmatprep.subr.mxu0 0.0
        %1152 = vmatpush1.msra.mxu0 0.0
        %1153 = vmatprep.subr.mxu0 0.0
        %1154 = vmatpush1.msra.mxu0 0.0
        %1155 = vmatprep.subr.mxu0 0.0
        %1156 = vmatpush1.msra.mxu0 0.0
        %1157 = vmatprep.subr.mxu0 0.0
        %1158 = vmatpush1.msra.mxu0 0.0
        %1159 = vmatprep.subr.mxu0 0.0
        %1160 = vmatpush1.msra.mxu0 0.0
        %1161 = vmatprep.subr.mxu0 0.0
        %1162 = vmatpush1.msra.mxu0 0.0
        %1163 = vmatprep.subr.mxu0 0.0
        %1164 = vmatpush1.msra.mxu0 0.0
        %1165 = vmatprep.subr.mxu0 0.0
        %1166 = vmatpush1.msra.mxu0 0.0
        %1167 = vmatprep.subr.mxu0 0.0
        %1168 = vmatpush1.msra.mxu0 0.0
        %1169 = vmatprep.subr.mxu0 0.0
        %1170 = vmatpush1.msra.mxu0 0.0
        %1171 = vmatprep.subr.mxu0 0.0
        %1172 = vmatpush1.msra.mxu0 0.0
        %1173 = vmatprep.subr.mxu0 0.0
        %1174 = vmatpush1.msra.mxu0 0.0
        %1175 = vmatprep.subr.mxu0 0.0
        %1176 = vmatpush1.msra.mxu0 0.0
        %1177 = vmatprep.subr.mxu0 0.0
        %1178 = vmatpush1.msra.mxu0 0.0
        %1179 = vmatprep.subr.mxu0 0.0
        %1180 = vmatpush1.msra.mxu0 0.0
        %1181 = vmatprep.subr.mxu0 0.0
        %1182 = vmatpush1.msra.mxu0 0.0
        %1183 = vmatprep.subr.mxu0 0.0
        %1184 = vmatpush1.msra.mxu0 0.0
        %1185 = vmatprep.subr.mxu0 0.0
        %1186 = vmatpush1.msra.mxu0 0.0
        %1187 = vmatprep.subr.mxu0 0.0
        %1188 = vmatpush1.msra.mxu0 0.0
        %1189 = vmatprep.subr.mxu0 0.0
        %1190 = vmatpush1.msra.mxu0 0.0
        %1191 = vmatprep.subr.mxu0 0.0
        %1192 = vmatpush1.msra.mxu0 0.0
        %1193 = vmatprep.subr.mxu0 0.0
        %1194 = vmatpush1.msra.mxu0 0.0
        %1195 = vmatprep.subr.mxu0 0.0
        %1196 = vmatpush1.msra.mxu0 0.0
        %1197 = vmatprep.subr.mxu0 0.0
        %1198 = vmatpush1.msra.mxu0 0.0
        %1199 = vmatprep.mubr.f32.mxu0 0.0
        %1200 = vmatmul.mubr.f32.gmra.mrb[0].mxu0 %v1054
        %v1201 = vpop.f32.mrb[0].mxu0
        %v1202 = vadd.f32 0.0, %v1201
        %v1203 = vpop.f32.mrb[0].mxu0
        %v1204 = vadd.f32 0.0, %v1203
        %1205 = vdwg.mxu0
        %v1206 = vadd.f32 %v1024, %v1131
        %v1207 = vadd.f32 %v1025, %v1133
        %v1208 = vadd.f32 %v1026, %v1202
        %v1209 = vadd.f32 %v1027, %v1204
        %v1210 = vld [vmem:[%s141] sm:$0xff]
        %v1211 = vld [vmem:[%s141 + $0x8] sm:$0xff]
        %v1212 = vld [vmem:[%s141 + $0x10] sm:$0xf]
        %s1213 = scalar_lea.vmem %s1, 48
        %v1214 = vld [vmem:[%s1213] sm:$0xff]
        %v1218 = vcombine.high %v1210, %v1210
        %v1219 = vcombine.high %v1211, %v1211
        %1220 = vrot.lane.b32.xlu0 %v1210, 48
        %v1221 = vpop.permute.xlu0 %1220
        %1222 = vrot.lane.b32.xlu0 %v1218, 48
        %v1223 = vpop.permute.xlu0 %1222
        %1224 = vrot.lane.b32.xlu0 %v1211, 48
        %v1225 = vpop.permute.xlu0 %1224
        %1226 = vrot.lane.b32.xlu0 %v1219, 48
        %v1227 = vpop.permute.xlu0 %1226
        %1228 = vrot.lane.b32.xlu0 %v1212, 48
        %v1229 = vpop.permute.xlu0 %1228
        %vm1230 = vcmask 392192
        %v1231 = vsel %vm1230, %v1221, %v1223
        %v1232 = vsel %vm1230, %v1223, %v1225
        %v1233 = vsel %vm1230, %v1225, %v1227
        %v1234 = vsel %vm1230, %v1227, %v1229
        %v1236 = vsel %vm170, %v1214, 0
        %v1238 = vsel %vm174, %v1231, 0
        %v1240 = vsel %vm174, %v1232, 0
        %v1242 = vsel %vm174, %v1233, 0
        %v1244 = vsel %vm174, %v1234, 0
        %1246 = vmatprep.subr.mxu0 %v1240
        %1247 = vmatpush1.msra.mxu0 %v1238
        %1248 = vmatprep.subr.mxu0 0.0
        %1249 = vmatpush1.msra.mxu0 0.0
        %1250 = vmatprep.subr.mxu0 0.0
        %1251 = vmatpush1.msra.mxu0 0.0
        %1252 = vmatprep.subr.mxu0 0.0
        %1253 = vmatpush1.msra.mxu0 0.0
        %1254 = vmatprep.subr.mxu0 0.0
        %1255 = vmatpush1.msra.mxu0 0.0
        %1256 = vmatprep.subr.mxu0 0.0
        %1257 = vmatpush1.msra.mxu0 0.0
        %1258 = vmatprep.subr.mxu0 0.0
        %1259 = vmatpush1.msra.mxu0 0.0
        %1260 = vmatprep.subr.mxu0 0.0
        %1261 = vmatpush1.msra.mxu0 0.0
        %1262 = vmatprep.subr.mxu0 0.0
        %1263 = vmatpush1.msra.mxu0 0.0
        %1264 = vmatprep.subr.mxu0 0.0
        %1265 = vmatpush1.msra.mxu0 0.0
        %1266 = vmatprep.subr.mxu0 0.0
        %1267 = vmatpush1.msra.mxu0 0.0
        %1268 = vmatprep.subr.mxu0 0.0
        %1269 = vmatpush1.msra.mxu0 0.0
        %1270 = vmatprep.subr.mxu0 0.0
        %1271 = vmatpush1.msra.mxu0 0.0
        %1272 = vmatprep.subr.mxu0 0.0
        %1273 = vmatpush1.msra.mxu0 0.0
        %1274 = vmatprep.subr.mxu0 0.0
        %1275 = vmatpush1.msra.mxu0 0.0
        %1276 = vmatprep.subr.mxu0 0.0
        %1277 = vmatpush1.msra.mxu0 0.0
        %1278 = vmatprep.subr.mxu0 0.0
        %1279 = vmatpush1.msra.mxu0 0.0
        %1280 = vmatprep.subr.mxu0 0.0
        %1281 = vmatpush1.msra.mxu0 0.0
        %1282 = vmatprep.subr.mxu0 0.0
        %1283 = vmatpush1.msra.mxu0 0.0
        %1284 = vmatprep.subr.mxu0 0.0
        %1285 = vmatpush1.msra.mxu0 0.0
        %1286 = vmatprep.subr.mxu0 0.0
        %1287 = vmatpush1.msra.mxu0 0.0
        %1288 = vmatprep.subr.mxu0 0.0
        %1289 = vmatpush1.msra.mxu0 0.0
        %1290 = vmatprep.subr.mxu0 0.0
        %1291 = vmatpush1.msra.mxu0 0.0
        %1292 = vmatprep.subr.mxu0 0.0
        %1293 = vmatpush1.msra.mxu0 0.0
        %1294 = vmatprep.subr.mxu0 0.0
        %1295 = vmatpush1.msra.mxu0 0.0
        %1296 = vmatprep.subr.mxu0 0.0
        %1297 = vmatpush1.msra.mxu0 0.0
        %1298 = vmatprep.subr.mxu0 0.0
        %1299 = vmatpush1.msra.mxu0 0.0
        %1300 = vmatprep.subr.mxu0 0.0
        %1301 = vmatpush1.msra.mxu0 0.0
        %1302 = vmatprep.subr.mxu0 0.0
        %1303 = vmatpush1.msra.mxu0 0.0
        %1304 = vmatprep.subr.mxu0 0.0
        %1305 = vmatpush1.msra.mxu0 0.0
        %1306 = vmatprep.subr.mxu0 0.0
        %1307 = vmatpush1.msra.mxu0 0.0
        %1308 = vmatprep.subr.mxu0 0.0
        %1309 = vmatpush1.msra.mxu0 0.0
        %1310 = vmatprep.mubr.f32.mxu0 0.0
        %1311 = vmatmul.mubr.f32.gmra.mrb[0].mxu0 %v1236
        %v1312 = vpop.f32.mrb[0].mxu0
        %v1313 = vadd.f32 0.0, %v1312
        %v1314 = vpop.f32.mrb[0].mxu0
        %v1315 = vadd.f32 0.0, %v1314
        %1316 = vdwg.mxu0
        %1317 = vmatprep.subr.mxu0 %v1244
        %1318 = vmatpush1.msra.mxu0 %v1242
        %1319 = vmatprep.subr.mxu0 0.0
        %1320 = vmatpush1.msra.mxu0 0.0
        %1321 = vmatprep.subr.mxu0 0.0
        %1322 = vmatpush1.msra.mxu0 0.0
        %1323 = vmatprep.subr.mxu0 0.0
        %1324 = vmatpush1.msra.mxu0 0.0
        %1325 = vmatprep.subr.mxu0 0.0
        %1326 = vmatpush1.msra.mxu0 0.0
        %1327 = vmatprep.subr.mxu0 0.0
        %1328 = vmatpush1.msra.mxu0 0.0
        %1329 = vmatprep.subr.mxu0 0.0
        %1330 = vmatpush1.msra.mxu0 0.0
        %1331 = vmatprep.subr.mxu0 0.0
        %1332 = vmatpush1.msra.mxu0 0.0
        %1333 = vmatprep.subr.mxu0 0.0
        %1334 = vmatpush1.msra.mxu0 0.0
        %1335 = vmatprep.subr.mxu0 0.0
        %1336 = vmatpush1.msra.mxu0 0.0
        %1337 = vmatprep.subr.mxu0 0.0
        %1338 = vmatpush1.msra.mxu0 0.0
        %1339 = vmatprep.subr.mxu0 0.0
        %1340 = vmatpush1.msra.mxu0 0.0
        %1341 = vmatprep.subr.mxu0 0.0
        %1342 = vmatpush1.msra.mxu0 0.0
        %1343 = vmatprep.subr.mxu0 0.0
        %1344 = vmatpush1.msra.mxu0 0.0
        %1345 = vmatprep.subr.mxu0 0.0
        %1346 = vmatpush1.msra.mxu0 0.0
        %1347 = vmatprep.subr.mxu0 0.0
        %1348 = vmatpush1.msra.mxu0 0.0
        %1349 = vmatprep.subr.mxu0 0.0
        %1350 = vmatpush1.msra.mxu0 0.0
        %1351 = vmatprep.subr.mxu0 0.0
        %1352 = vmatpush1.msra.mxu0 0.0
        %1353 = vmatprep.subr.mxu0 0.0
        %1354 = vmatpush1.msra.mxu0 0.0
        %1355 = vmatprep.subr.mxu0 0.0
        %1356 = vmatpush1.msra.mxu0 0.0
        %1357 = vmatprep.subr.mxu0 0.0
        %1358 = vmatpush1.msra.mxu0 0.0
        %1359 = vmatprep.subr.mxu0 0.0
        %1360 = vmatpush1.msra.mxu0 0.0
        %1361 = vmatprep.subr.mxu0 0.0
        %1362 = vmatpush1.msra.mxu0 0.0
        %1363 = vmatprep.subr.mxu0 0.0
        %1364 = vmatpush1.msra.mxu0 0.0
        %1365 = vmatprep.subr.mxu0 0.0
        %1366 = vmatpush1.msra.mxu0 0.0
        %1367 = vmatprep.subr.mxu0 0.0
        %1368 = vmatpush1.msra.mxu0 0.0
        %1369 = vmatprep.subr.mxu0 0.0
        %1370 = vmatpush1.msra.mxu0 0.0
        %1371 = vmatprep.subr.mxu0 0.0
        %1372 = vmatpush1.msra.mxu0 0.0
        %1373 = vmatprep.subr.mxu0 0.0
        %1374 = vmatpush1.msra.mxu0 0.0
        %1375 = vmatprep.subr.mxu0 0.0
        %1376 = vmatpush1.msra.mxu0 0.0
        %1377 = vmatprep.subr.mxu0 0.0
        %1378 = vmatpush1.msra.mxu0 0.0
        %1379 = vmatprep.subr.mxu0 0.0
        %1380 = vmatpush1.msra.mxu0 0.0
        %1381 = vmatprep.mubr.f32.mxu0 0.0
        %1382 = vmatmul.mubr.f32.gmra.mrb[0].mxu0 %v1236
        %v1383 = vpop.f32.mrb[0].mxu0
        %v1384 = vadd.f32 0.0, %v1383
        %v1385 = vpop.f32.mrb[0].mxu0
        %v1386 = vadd.f32 0.0, %v1385
        %1387 = vdwg.mxu0
        %v1388 = vadd.f32 %v1206, %v1313
        %v1389 = vadd.f32 %v1207, %v1315
        %v1390 = vadd.f32 %v1208, %v1384
        %v1391 = vadd.f32 %v1209, %v1386
        %v1392 = vld [vmem:[%s141] sm:$0xff]
        %v1393 = vld [vmem:[%s141 + $0x8] sm:$0xff]
        %v1394 = vld [vmem:[%s141 + $0x10] sm:$0xf]
        %s1395 = scalar_lea.vmem %s1, 56
        %v1396 = vld [vmem:[%s1395] sm:$0xff]
        %v1400 = vcombine.high %v1392, %v1392
        %v1401 = vcombine.high %v1393, %v1393
        %1402 = vrot.lane.b32.xlu0 %v1392, 46
        %v1403 = vpop.permute.xlu0 %1402
        %1404 = vrot.lane.b32.xlu0 %v1400, 46
        %v1405 = vpop.permute.xlu0 %1404
        %1406 = vrot.lane.b32.xlu0 %v1393, 46
        %v1407 = vpop.permute.xlu0 %1406
        %1408 = vrot.lane.b32.xlu0 %v1401, 46
        %v1409 = vpop.permute.xlu0 %1408
        %1410 = vrot.lane.b32.xlu0 %v1394, 46
        %v1411 = vpop.permute.xlu0 %1410
        %vm1412 = vcmask 375808
        %v1413 = vsel %vm1412, %v1403, %v1405
        %v1414 = vsel %vm1412, %v1405, %v1407
        %v1415 = vsel %vm1412, %v1407, %v1409
        %v1416 = vsel %vm1412, %v1409, %v1411
        %v1418 = vsel %vm170, %v1396, 0
        %v1420 = vsel %vm174, %v1413, 0
        %v1422 = vsel %vm174, %v1414, 0
        %v1424 = vsel %vm174, %v1415, 0
        %v1426 = vsel %vm174, %v1416, 0
        %1428 = vmatprep.subr.mxu0 %v1422
        %1429 = vmatpush1.msra.mxu0 %v1420
        %1430 = vmatprep.subr.mxu0 0.0
        %1431 = vmatpush1.msra.mxu0 0.0
        %1432 = vmatprep.subr.mxu0 0.0
        %1433 = vmatpush1.msra.mxu0 0.0
        %1434 = vmatprep.subr.mxu0 0.0
        %1435 = vmatpush1.msra.mxu0 0.0
        %1436 = vmatprep.subr.mxu0 0.0
        %1437 = vmatpush1.msra.mxu0 0.0
        %1438 = vmatprep.subr.mxu0 0.0
        %1439 = vmatpush1.msra.mxu0 0.0
        %1440 = vmatprep.subr.mxu0 0.0
        %1441 = vmatpush1.msra.mxu0 0.0
        %1442 = vmatprep.subr.mxu0 0.0
        %1443 = vmatpush1.msra.mxu0 0.0
        %1444 = vmatprep.subr.mxu0 0.0
        %1445 = vmatpush1.msra.mxu0 0.0
        %1446 = vmatprep.subr.mxu0 0.0
        %1447 = vmatpush1.msra.mxu0 0.0
        %1448 = vmatprep.subr.mxu0 0.0
        %1449 = vmatpush1.msra.mxu0 0.0
        %1450 = vmatprep.subr.mxu0 0.0
        %1451 = vmatpush1.msra.mxu0 0.0
        %1452 = vmatprep.subr.mxu0 0.0
        %1453 = vmatpush1.msra.mxu0 0.0
        %1454 = vmatprep.subr.mxu0 0.0
        %1455 = vmatpush1.msra.mxu0 0.0
        %1456 = vmatprep.subr.mxu0 0.0
        %1457 = vmatpush1.msra.mxu0 0.0
        %1458 = vmatprep.subr.mxu0 0.0
        %1459 = vmatpush1.msra.mxu0 0.0
        %1460 = vmatprep.subr.mxu0 0.0
        %1461 = vmatpush1.msra.mxu0 0.0
        %1462 = vmatprep.subr.mxu0 0.0
        %1463 = vmatpush1.msra.mxu0 0.0
        %1464 = vmatprep.subr.mxu0 0.0
        %1465 = vmatpush1.msra.mxu0 0.0
        %1466 = vmatprep.subr.mxu0 0.0
        %1467 = vmatpush1.msra.mxu0 0.0
        %1468 = vmatprep.subr.mxu0 0.0
        %1469 = vmatpush1.msra.mxu0 0.0
        %1470 = vmatprep.subr.mxu0 0.0
        %1471 = vmatpush1.msra.mxu0 0.0
        %1472 = vmatprep.subr.mxu0 0.0
        %1473 = vmatpush1.msra.mxu0 0.0
        %1474 = vmatprep.subr.mxu0 0.0
        %1475 = vmatpush1.msra.mxu0 0.0
        %1476 = vmatprep.subr.mxu0 0.0
        %1477 = vmatpush1.msra.mxu0 0.0
        %1478 = vmatprep.subr.mxu0 0.0
        %1479 = vmatpush1.msra.mxu0 0.0
        %1480 = vmatprep.subr.mxu0 0.0
        %1481 = vmatpush1.msra.mxu0 0.0
        %1482 = vmatprep.subr.mxu0 0.0
        %1483 = vmatpush1.msra.mxu0 0.0
        %1484 = vmatprep.subr.mxu0 0.0
        %1485 = vmatpush1.msra.mxu0 0.0
        %1486 = vmatprep.subr.mxu0 0.0
        %1487 = vmatpush1.msra.mxu0 0.0
        %1488 = vmatprep.subr.mxu0 0.0
        %1489 = vmatpush1.msra.mxu0 0.0
        %1490 = vmatprep.subr.mxu0 0.0
        %1491 = vmatpush1.msra.mxu0 0.0
        %1492 = vmatprep.mubr.f32.mxu0 0.0
        %1493 = vmatmul.mubr.f32.gmra.mrb[0].mxu0 %v1418
        %v1494 = vpop.f32.mrb[0].mxu0
        %v1495 = vadd.f32 0.0, %v1494
        %v1496 = vpop.f32.mrb[0].mxu0
        %v1497 = vadd.f32 0.0, %v1496
        %1498 = vdwg.mxu0
        %1499 = vmatprep.subr.mxu0 %v1426
        %1500 = vmatpush1.msra.mxu0 %v1424
        %1501 = vmatprep.subr.mxu0 0.0
        %1502 = vmatpush1.msra.mxu0 0.0
        %1503 = vmatprep.subr.mxu0 0.0
        %1504 = vmatpush1.msra.mxu0 0.0
        %1505 = vmatprep.subr.mxu0 0.0
        %1506 = vmatpush1.msra.mxu0 0.0
        %1507 = vmatprep.subr.mxu0 0.0
        %1508 = vmatpush1.msra.mxu0 0.0
        %1509 = vmatprep.subr.mxu0 0.0
        %1510 = vmatpush1.msra.mxu0 0.0
        %1511 = vmatprep.subr.mxu0 0.0
        %1512 = vmatpush1.msra.mxu0 0.0
        %1513 = vmatprep.subr.mxu0 0.0
        %1514 = vmatpush1.msra.mxu0 0.0
        %1515 = vmatprep.subr.mxu0 0.0
        %1516 = vmatpush1.msra.mxu0 0.0
        %1517 = vmatprep.subr.mxu0 0.0
        %1518 = vmatpush1.msra.mxu0 0.0
        %1519 = vmatprep.subr.mxu0 0.0
        %1520 = vmatpush1.msra.mxu0 0.0
        %1521 = vmatprep.subr.mxu0 0.0
        %1522 = vmatpush1.msra.mxu0 0.0
        %1523 = vmatprep.subr.mxu0 0.0
        %1524 = vmatpush1.msra.mxu0 0.0
        %1525 = vmatprep.subr.mxu0 0.0
        %1526 = vmatpush1.msra.mxu0 0.0
        %1527 = vmatprep.subr.mxu0 0.0
        %1528 = vmatpush1.msra.mxu0 0.0
        %1529 = vmatprep.subr.mxu0 0.0
        %1530 = vmatpush1.msra.mxu0 0.0
        %1531 = vmatprep.subr.mxu0 0.0
        %1532 = vmatpush1.msra.mxu0 0.0
        %1533 = vmatprep.subr.mxu0 0.0
        %1534 = vmatpush1.msra.mxu0 0.0
        %1535 = vmatprep.subr.mxu0 0.0
        %1536 = vmatpush1.msra.mxu0 0.0
        %1537 = vmatprep.subr.mxu0 0.0
        %1538 = vmatpush1.msra.mxu0 0.0
        %1539 = vmatprep.subr.mxu0 0.0
        %1540 = vmatpush1.msra.mxu0 0.0
        %1541 = vmatprep.subr.mxu0 0.0
        %1542 = vmatpush1.msra.mxu0 0.0
        %1543 = vmatprep.subr.mxu0 0.0
        %1544 = vmatpush1.msra.mxu0 0.0
        %1545 = vmatprep.subr.mxu0 0.0
        %1546 = vmatpush1.msra.mxu0 0.0
        %1547 = vmatprep.subr.mxu0 0.0
        %1548 = vmatpush1.msra.mxu0 0.0
        %1549 = vmatprep.subr.mxu0 0.0
        %1550 = vmatpush1.msra.mxu0 0.0
        %1551 = vmatprep.subr.mxu0 0.0
        %1552 = vmatpush1.msra.mxu0 0.0
        %1553 = vmatprep.subr.mxu0 0.0
        %1554 = vmatpush1.msra.mxu0 0.0
        %1555 = vmatprep.subr.mxu0 0.0
        %1556 = vmatpush1.msra.mxu0 0.0
        %1557 = vmatprep.subr.mxu0 0.0
        %1558 = vmatpush1.msra.mxu0 0.0
        %1559 = vmatprep.subr.mxu0 0.0
        %1560 = vmatpush1.msra.mxu0 0.0
        %1561 = vmatprep.subr.mxu0 0.0
        %1562 = vmatpush1.msra.mxu0 0.0
        %1563 = vmatprep.mubr.f32.mxu0 0.0
        %1564 = vmatmul.mubr.f32.gmra.mrb[0].mxu0 %v1418
        %v1565 = vpop.f32.mrb[0].mxu0
        %v1566 = vadd.f32 0.0, %v1565
        %v1567 = vpop.f32.mrb[0].mxu0
        %v1568 = vadd.f32 0.0, %v1567
        %1569 = vdwg.mxu0
        %v1570 = vadd.f32 %v1388, %v1495
        %v1571 = vadd.f32 %v1389, %v1497
        %v1572 = vadd.f32 %v1390, %v1566
        %v1573 = vadd.f32 %v1391, %v1568
        %v1574 = vld [vmem:[%s141] sm:$0xff]
        %v1575 = vld [vmem:[%s141 + $0x8] sm:$0xff]
        %v1576 = vld [vmem:[%s141 + $0x10] sm:$0xf]
        %s1577 = scalar_lea.vmem %s1, 64
        %v1578 = vld [vmem:[%s1577] sm:$0xff]
        %v1582 = vcombine.high %v1574, %v1574
        %v1583 = vcombine.high %v1575, %v1575
        %1584 = vrot.lane.b32.xlu0 %v1574, 44
        %v1585 = vpop.permute.xlu0 %1584
        %1586 = vrot.lane.b32.xlu0 %v1582, 44
        %v1587 = vpop.permute.xlu0 %1586
        %1588 = vrot.lane.b32.xlu0 %v1575, 44
        %v1589 = vpop.permute.xlu0 %1588
        %1590 = vrot.lane.b32.xlu0 %v1583, 44
        %v1591 = vpop.permute.xlu0 %1590
        %1592 = vrot.lane.b32.xlu0 %v1576, 44
        %v1593 = vpop.permute.xlu0 %1592
        %vm1594 = vcmask 359424
        %v1595 = vsel %vm1594, %v1585, %v1587
        %v1596 = vsel %vm1594, %v1587, %v1589
        %v1597 = vsel %vm1594, %v1589, %v1591
        %v1598 = vsel %vm1594, %v1591, %v1593
        %v1600 = vsel %vm170, %v1578, 0
        %v1602 = vsel %vm174, %v1595, 0
        %v1604 = vsel %vm174, %v1596, 0
        %v1606 = vsel %vm174, %v1597, 0
        %v1608 = vsel %vm174, %v1598, 0
        %1610 = vmatprep.subr.mxu0 %v1604
        %1611 = vmatpush1.msra.mxu0 %v1602
        %1612 = vmatprep.subr.mxu0 0.0
        %1613 = vmatpush1.msra.mxu0 0.0
        %1614 = vmatprep.subr.mxu0 0.0
        %1615 = vmatpush1.msra.mxu0 0.0
        %1616 = vmatprep.subr.mxu0 0.0
        %1617 = vmatpush1.msra.mxu0 0.0
        %1618 = vmatprep.subr.mxu0 0.0
        %1619 = vmatpush1.msra.mxu0 0.0
        %1620 = vmatprep.subr.mxu0 0.0
        %1621 = vmatpush1.msra.mxu0 0.0
        %1622 = vmatprep.subr.mxu0 0.0
        %1623 = vmatpush1.msra.mxu0 0.0
        %1624 = vmatprep.subr.mxu0 0.0
        %1625 = vmatpush1.msra.mxu0 0.0
        %1626 = vmatprep.subr.mxu0 0.0
        %1627 = vmatpush1.msra.mxu0 0.0
        %1628 = vmatprep.subr.mxu0 0.0
        %1629 = vmatpush1.msra.mxu0 0.0
        %1630 = vmatprep.subr.mxu0 0.0
        %1631 = vmatpush1.msra.mxu0 0.0
        %1632 = vmatprep.subr.mxu0 0.0
        %1633 = vmatpush1.msra.mxu0 0.0
        %1634 = vmatprep.subr.mxu0 0.0
        %1635 = vmatpush1.msra.mxu0 0.0
        %1636 = vmatprep.subr.mxu0 0.0
        %1637 = vmatpush1.msra.mxu0 0.0
        %1638 = vmatprep.subr.mxu0 0.0
        %1639 = vmatpush1.msra.mxu0 0.0
        %1640 = vmatprep.subr.mxu0 0.0
        %1641 = vmatpush1.msra.mxu0 0.0
        %1642 = vmatprep.subr.mxu0 0.0
        %1643 = vmatpush1.msra.mxu0 0.0
        %1644 = vmatprep.subr.mxu0 0.0
        %1645 = vmatpush1.msra.mxu0 0.0
        %1646 = vmatprep.subr.mxu0 0.0
        %1647 = vmatpush1.msra.mxu0 0.0
        %1648 = vmatprep.subr.mxu0 0.0
        %1649 = vmatpush1.msra.mxu0 0.0
        %1650 = vmatprep.subr.mxu0 0.0
        %1651 = vmatpush1.msra.mxu0 0.0
        %1652 = vmatprep.subr.mxu0 0.0
        %1653 = vmatpush1.msra.mxu0 0.0
        %1654 = vmatprep.subr.mxu0 0.0
        %1655 = vmatpush1.msra.mxu0 0.0
        %1656 = vmatprep.subr.mxu0 0.0
        %1657 = vmatpush1.msra.mxu0 0.0
        %1658 = vmatprep.subr.mxu0 0.0
        %1659 = vmatpush1.msra.mxu0 0.0
        %1660 = vmatprep.subr.mxu0 0.0
        %1661 = vmatpush1.msra.mxu0 0.0
        %1662 = vmatprep.subr.mxu0 0.0
        %1663 = vmatpush1.msra.mxu0 0.0
        %1664 = vmatprep.subr.mxu0 0.0
        %1665 = vmatpush1.msra.mxu0 0.0
        %1666 = vmatprep.subr.mxu0 0.0
        %1667 = vmatpush1.msra.mxu0 0.0
        %1668 = vmatprep.subr.mxu0 0.0
        %1669 = vmatpush1.msra.mxu0 0.0
        %1670 = vmatprep.subr.mxu0 0.0
        %1671 = vmatpush1.msra.mxu0 0.0
        %1672 = vmatprep.subr.mxu0 0.0
        %1673 = vmatpush1.msra.mxu0 0.0
        %1674 = vmatprep.mubr.f32.mxu0 0.0
        %1675 = vmatmul.mubr.f32.gmra.mrb[0].mxu0 %v1600
        %v1676 = vpop.f32.mrb[0].mxu0
        %v1677 = vadd.f32 0.0, %v1676
        %v1678 = vpop.f32.mrb[0].mxu0
        %v1679 = vadd.f32 0.0, %v1678
        %1680 = vdwg.mxu0
        %1681 = vmatprep.subr.mxu0 %v1608
        %1682 = vmatpush1.msra.mxu0 %v1606
        %1683 = vmatprep.subr.mxu0 0.0
        %1684 = vmatpush1.msra.mxu0 0.0
        %1685 = vmatprep.subr.mxu0 0.0
        %1686 = vmatpush1.msra.mxu0 0.0
        %1687 = vmatprep.subr.mxu0 0.0
        %1688 = vmatpush1.msra.mxu0 0.0
        %1689 = vmatprep.subr.mxu0 0.0
        %1690 = vmatpush1.msra.mxu0 0.0
        %1691 = vmatprep.subr.mxu0 0.0
        %1692 = vmatpush1.msra.mxu0 0.0
        %1693 = vmatprep.subr.mxu0 0.0
        %1694 = vmatpush1.msra.mxu0 0.0
        %1695 = vmatprep.subr.mxu0 0.0
        %1696 = vmatpush1.msra.mxu0 0.0
        %1697 = vmatprep.subr.mxu0 0.0
        %1698 = vmatpush1.msra.mxu0 0.0
        %1699 = vmatprep.subr.mxu0 0.0
        %1700 = vmatpush1.msra.mxu0 0.0
        %1701 = vmatprep.subr.mxu0 0.0
        %1702 = vmatpush1.msra.mxu0 0.0
        %1703 = vmatprep.subr.mxu0 0.0
        %1704 = vmatpush1.msra.mxu0 0.0
        %1705 = vmatprep.subr.mxu0 0.0
        %1706 = vmatpush1.msra.mxu0 0.0
        %1707 = vmatprep.subr.mxu0 0.0
        %1708 = vmatpush1.msra.mxu0 0.0
        %1709 = vmatprep.subr.mxu0 0.0
        %1710 = vmatpush1.msra.mxu0 0.0
        %1711 = vmatprep.subr.mxu0 0.0
        %1712 = vmatpush1.msra.mxu0 0.0
        %1713 = vmatprep.subr.mxu0 0.0
        %1714 = vmatpush1.msra.mxu0 0.0
        %1715 = vmatprep.subr.mxu0 0.0
        %1716 = vmatpush1.msra.mxu0 0.0
        %1717 = vmatprep.subr.mxu0 0.0
        %1718 = vmatpush1.msra.mxu0 0.0
        %1719 = vmatprep.subr.mxu0 0.0
        %1720 = vmatpush1.msra.mxu0 0.0
        %1721 = vmatprep.subr.mxu0 0.0
        %1722 = vmatpush1.msra.mxu0 0.0
        %1723 = vmatprep.subr.mxu0 0.0
        %1724 = vmatpush1.msra.mxu0 0.0
        %1725 = vmatprep.subr.mxu0 0.0
        %1726 = vmatpush1.msra.mxu0 0.0
        %1727 = vmatprep.subr.mxu0 0.0
        %1728 = vmatpush1.msra.mxu0 0.0
        %1729 = vmatprep.subr.mxu0 0.0
        %1730 = vmatpush1.msra.mxu0 0.0
        %1731 = vmatprep.subr.mxu0 0.0
        %1732 = vmatpush1.msra.mxu0 0.0
        %1733 = vmatprep.subr.mxu0 0.0
        %1734 = vmatpush1.msra.mxu0 0.0
        %1735 = vmatprep.subr.mxu0 0.0
        %1736 = vmatpush1.msra.mxu0 0.0
        %1737 = vmatprep.subr.mxu0 0.0
        %1738 = vmatpush1.msra.mxu0 0.0
        %1739 = vmatprep.subr.mxu0 0.0
        %1740 = vmatpush1.msra.mxu0 0.0
        %1741 = vmatprep.subr.mxu0 0.0
        %1742 = vmatpush1.msra.mxu0 0.0
        %1743 = vmatprep.subr.mxu0 0.0
        %1744 = vmatpush1.msra.mxu0 0.0
        %1745 = vmatprep.mubr.f32.mxu0 0.0
        %1746 = vmatmul.mubr.f32.gmra.mrb[0].mxu0 %v1600
        %v1747 = vpop.f32.mrb[0].mxu0
        %v1748 = vadd.f32 0.0, %v1747
        %v1749 = vpop.f32.mrb[0].mxu0
        %v1750 = vadd.f32 0.0, %v1749
        %1751 = vdwg.mxu0
        %v1752 = vadd.f32 %v1570, %v1677
        %v1753 = vadd.f32 %v1571, %v1679
        %v1754 = vadd.f32 %v1572, %v1748
        %v1755 = vadd.f32 %v1573, %v1750
        %1756 = vst [vmem:[%s136] sm:$0xff] %v1752
        %1757 = vst [vmem:[%s136 + $0x8] sm:$0xff] %v1753
        %1758 = vst [vmem:[%s136 + $0x10] sm:$0xff] %v1754
        %1759 = vst [vmem:[%s136 + $0x18] sm:$0xff] %v1755
        %s1760 = sand.u32 %s71, 1
        %s1761 = scalar_lea.sflag [#allocation3], %s1760
        %s1762 = sand.u32 %s71, 1
        %s1763 = smul.addr %s1762, 32
        %s1764 = scalar_lea.vmem [#allocation2], %s1763
        // Predicated region
        $region29: #{tpu_custom_call.1} parent=27 // pred_check
          %p1765 = pneg %p81
        $region30: #{tpu_custom_call.1} parent=27 // pred_check_branch
          %1767 = sbr.rel (%p1765) target = $region32
        $region31: #{tpu_custom_call.1} parent=27 // pred_region
          %s1769 = ssub.s32 512, 512
          %1770 = vsyncadd %s1761, %s1769
          %s1771 = smul.addr %s16, 4
          %s1772 = smul.addr %s1771, 128
          %s1773 = scalar_lea.hbm %s2, %s1772
          %s1775 = sshll.u32 %s1764, 4
          %s1776 = int_to_ptr.vmem [resolvable:$true] %s1775
          %1778 = dma.vmem_to_hbm [thread:$0]  %s1776, 512, %s1773, %s1761
        $region32: #{tpu_custom_call.1} parent=27 // pred_fallthru
          _
      $region28: #{tpu_custom_call.1} parent=5 // pred_fallthru
        _
      %p1779 = scmp.le.s32.totalorder 2, %s11
      // Predicated region
      $region33: #{tpu_custom_call.1} parent=5 // pred_check
        %p1780 = pneg %p1779
      $region34: #{tpu_custom_call.1} parent=5 // pred_check_branch
        %1782 = sbr.rel (%p1780) target = $region36
      $region35: #{tpu_custom_call.1} parent=5 // pred_region
        %s1783 = ssub.s32 %s11, 2
        // Predicated region
        $region37: #{tpu_custom_call.1} parent=35 // pred_check
          %p1784 = pneg %p87
        $region38: #{tpu_custom_call.1} parent=35 // pred_check_branch
          %1786 = sbr.rel (%p1784) target = $region40
        $region39: #{tpu_custom_call.1} parent=35 // pred_region
          %s1787 = sand.u32 %s72, 1
          %s1788 = scalar_lea.sflag [#allocation3], %s1787
          %s1789 = sand.u32 %s72, 1
          %s1790 = smul.addr %s1789, 32
          %s1791 = scalar_lea.vmem [#allocation2], %s1790
          %1792 = dma.done %s1788, 512
        $region40: #{tpu_custom_call.1} parent=35 // pred_fallthru
          _
      $region36: #{tpu_custom_call.1} parent=5 // pred_fallthru
        _
    $region6: #{tpu_custom_call.1} parent=1 // loop_footer
      %s15 = sadd.s32 1, %s11
    $region7: #{tpu_custom_call.1} parent=1 // loop_footer_branch
      %10 = sbr.rel target = $region3
    $region8: #{tpu_custom_call.1} parent=1 // loop_exit
      _
    %1793 = vsyncpa [#allocation3], 1
    %s1794 = scalar_lea.sflag [#allocation3], 1
    %1795 = vsyncpa %s1794, 1

</llo_original>
